<compile_context>
chip_gen: v7x
topology: tpu7x:2x2x1
jax: 0.10.0
libtpu: 0.0.40
codegen_flags: <defaults>
</compile_context>

<pallas_src>
import functools
import jax
import jax.numpy as jnp
from jax.experimental import pallas as pl
from jax.experimental.pallas import tpu as pltpu


def _round_up(x, m):
  return (x + m - 1) // m * m


# ----------------------------------------------------------------------------
# Pallas kernel: full Half_Graph pixel-wise compute for one (batch, pixel) tile
# ----------------------------------------------------------------------------
def _half_graph_kernel(H, offs,
                       xf_ref, xh0_ref, xh1_ref, xh2_ref,
                       xp0_ref, xp1_ref, xp2_ref, xp3_ref, xp4_ref, xp5_ref,
                       attu_ref, attl_ref, w_ref, b_ref,
                       xhu_ref, xhl_ref, dmap_ref):
  f32, bf16 = jnp.float32, jnp.bfloat16
  TM = xf_ref.shape[-1]

  def mm(name, cout, cin, x_bf16):
    # bf16 weight slice x bf16 activation -> f32 accumulate, + f32 bias
    o = offs[name]
    w = w_ref[o:o + cout, 0:cin]                    # bf16 (cout, cin)
    b = b_ref[o:o + cout, :]                        # f32  (cout, 1)
    return jnp.dot(w, x_bf16, preferred_element_type=f32) + b

  xf, xh0, xh1, xh2 = xf_ref[...], xh0_ref[...], xh1_ref[...], xh2_ref[...]
  parts = (xp0_ref[...], xp1_ref[...], xp2_ref[...],
           xp3_ref[...], xp4_ref[...], xp5_ref[...])

  # ---- Decomp_att: conv(3H->H)+BN+ReLU, conv(H->3), softmax over channels ---
  fh = jnp.concatenate([xf, xh1, xh2], axis=0).astype(bf16)      # (3H, TM)
  t = jnp.maximum(mm("fh1", H, 3 * H, fh), 0.0)                  # (H, TM) f32
  dmap = mm("fh2", 3, H, t.astype(bf16))                         # (3, TM) logits
  e = jnp.exp(dmap - jnp.max(dmap, axis=0, keepdims=True))
  att = e / jnp.sum(e, axis=0, keepdims=True)                    # exact softmax
  a1 = att[1:2, :]                                               # (1, TM)
  a2 = att[2:3, :]

  # ---- Decomposition (shared conv_fh): both branches batched along lanes ----
  dec_in = jnp.concatenate([(xf * a1 + xh1).astype(bf16),
                            (xf * a2 + xh2).astype(bf16)], axis=-1)  # (H, 2TM)
  dec = jnp.maximum(mm("dec", H, H, dec_in), 0.0)
  dec0, dec1 = dec[:, 0:TM], dec[:, TM:2 * TM]

  # ---- Composition: all parts of a branch batched into one MXU matmul -------
  cu = attu_ref[...]                                   # (1, TM) sum upper atts
  cl = attl_ref[...]                                   # (1, TM) sum lower atts
  comp_in_u = jnp.concatenate(
      [(xh0 + parts[p] * cu).astype(bf16) for p in range(4)], axis=-1)
  ru = jnp.maximum(mm("cu", H, H, comp_in_u), 0.0)               # (H, 4TM)
  comp_u = (ru[:, 0:TM] + ru[:, TM:2 * TM]
            + ru[:, 2 * TM:3 * TM] + ru[:, 3 * TM:4 * TM])
  comp_in_l = jnp.concatenate(
      [(xh1 + parts[p] * cl).astype(bf16) for p in (4, 5)], axis=-1)
  rl = jnp.maximum(mm("cl", H, H, comp_in_l), 0.0)               # (H, 2TM)
  comp_l = rl[:, 0:TM] + rl[:, TM:2 * TM]

  # ---- ConvGRU updates, block-diagonally fused across upper/lower branches --
  msg_u = dec0 + comp_u
  msg_l = dec1 + comp_l
  msg_u_b, msg_l_b = msg_u.astype(bf16), msg_l.astype(bf16)
  g = mm("g", 4 * H, 4 * H,
         jnp.concatenate([msg_u_b, xh0.astype(bf16),
                          msg_l_b, xh1.astype(bf16)], axis=0))   # (4H, TM)
  r_u = jax.nn.sigmoid(g[0:H, :])
  z_u = jax.nn.sigmoid(g[H:2 * H, :])
  r_l = jax.nn.sigmoid(g[2 * H:3 * H, :])
  z_l = jax.nn.sigmoid(g[3 * H:4 * H, :])
  n = jnp.tanh(mm("n", 2 * H, 4 * H,
                  jnp.concatenate([msg_u_b, (r_u * xh0).astype(bf16),
                                   msg_l_b, (r_l * xh1).astype(bf16)],
                                  axis=0)))                      # (2H, TM)

  xhu_ref[...] = (1.0 - z_u) * xh0 + z_u * n[0:H, :]
  xhl_ref[...] = (1.0 - z_l) * xh1 + z_l * n[H:2 * H, :]
  dmap_ref[...] = dmap


# ----------------------------------------------------------------------------
# Weight packing: fuse GRU convs block-diagonally, pack everything into 2 slabs
# ----------------------------------------------------------------------------
def _pack_params(params, H):
  f32 = jnp.float32
  kd = lambda w: jnp.asarray(w, f32).T               # (Cin,Cout) -> (Cout,Cin)

  wg = jnp.zeros((4 * H, 4 * H), f32)                # fused GRU gates
  wg = wg.at[0:2 * H, 0:2 * H].set(kd(params["wgu"]))
  wg = wg.at[2 * H:4 * H, 2 * H:4 * H].set(kd(params["wgl"]))
  bg = jnp.concatenate([jnp.ravel(params["bgu"]), jnp.ravel(params["bgl"])])
  wn = jnp.zeros((2 * H, 4 * H), f32)                # fused GRU candidates
  wn = wn.at[0:H, 0:2 * H].set(kd(params["wnu"]))
  wn = wn.at[H:2 * H, 2 * H:4 * H].set(kd(params["wnl"]))
  bn = jnp.concatenate([jnp.ravel(params["bnu"]), jnp.ravel(params["bnl"])])

  segs = [("fh1", kd(params["wfh1"]), params["bfh1"]),
          ("fh2", kd(params["wfh2"]), params["bfh2"]),
          ("dec", kd(params["wdec"]), params["bdec"]),
          ("cu", kd(params["wcu"]), params["bcu"]),
          ("cl", kd(params["wcl"]), params["bcl"]),
          ("g", wg, bg),
          ("n", wn, bn)]

  cmax = 4 * H
  offs, row = {}, 0
  for name, w, _ in segs:
    row = _round_up(row, 16)          # bf16 sublane-tile aligned slices
    offs[name] = row
    row += w.shape[0]
  total = _round_up(row, 16)

  w_slab = jnp.zeros((total, cmax), f32)
  b_slab = jnp.zeros((total, 1), f32)
  for name, w, b in segs:
    o = offs[name]
    w_slab = w_slab.at[o:o + w.shape[0], 0:w.shape[1]].set(w)
    b_slab = b_slab.at[o:o + w.shape[0], 0].set(jnp.ravel(b).astype(f32))
  return w_slab.astype(jnp.bfloat16), b_slab, offs


# ----------------------------------------------------------------------------
# pallas_call wrapper
# ----------------------------------------------------------------------------
def _pick_tile(hw, n):
  assert hw % 128 == 0
  for t in (1024, 512, 256, 128):
    if hw % t:
      continue
    if n * (hw // t) < 2 and t > 128:
      continue                        # keep >=2 grid steps (both v7x TCs fed)
    return t
  return 128


def half_graph_pallas(feats, attu, attl, w_slab, b_slab, offs, hid, *, thw=None):
  n, _, hw = feats[0].shape
  if thw is None:
    thw = _pick_tile(hw, n)
  assert hw % thw == 0
  grid = (n, hw // thw)
  row = lambda c: pl.BlockSpec((None, c, thw), lambda b, i: (b, 0, i))
  full = lambda a: pl.BlockSpec(a.shape, lambda b, i: (0, 0))
  out_shape = (jax.ShapeDtypeStruct((n, hid, hw), jnp.float32),
               jax.ShapeDtypeStruct((n, hid, hw), jnp.float32),
               jax.ShapeDtypeStruct((n, 3, hw), jnp.float32))
  return pl.pallas_call(
      functools.partial(_half_graph_kernel, hid, offs),
      grid=grid,
      in_specs=[row(hid)] * 10 + [row(1), row(1), full(w_slab), full(b_slab)],
      out_specs=[row(hid), row(hid), row(3)],
      out_shape=out_shape,
      compiler_params=pltpu.CompilerParams(
          dimension_semantics=("parallel", "parallel"),
          vmem_limit_bytes=48 * 1024 * 1024),
  )(*feats, attu, attl, w_slab, b_slab)


# ----------------------------------------------------------------------------
# Module-level forward (plain-JAX glue: view reshapes only, no pre-pass copies)
# ----------------------------------------------------------------------------
def half_graph_forward(xf_list, xh_list, xp_list, f_att_list, h_att_list,
                       p_att_list, params, upper=(1, 2, 3, 4), lower=(5, 6)):
  del f_att_list, h_att_list            # unused by Half_Graph.forward
  n, hid, h, w = xh_list[0].shape
  hw = h * w
  feats = ([xf_list[1], xh_list[0], xh_list[1], xh_list[2]]
           + [xp_list[i - 1] for i in list(upper) + list(lower)])
  feats = [jnp.asarray(f, jnp.float32).reshape(n, hid, hw) for f in feats]
  attu = sum(p_att_list[i] for i in upper).astype(jnp.float32).reshape(n, 1, hw)
  attl = sum(p_att_list[i] for i in lower).astype(jnp.float32).reshape(n, 1, hw)

  pad = (-hw) % 128                     # keep lane-dense tiles for any H*W
  if pad:
    padp = ((0, 0), (0, 0), (0, pad))
    feats = [jnp.pad(f, padp) for f in feats]
    attu, attl = jnp.pad(attu, padp), jnp.pad(attl, padp)

  w_slab, b_slab, offs = _pack_params(params, hid)
  xh_u, xh_l, dmap = half_graph_pallas(feats, attu, attl, w_slab, b_slab,
                                       offs, hid)
  if pad:
    xh_u, xh_l, dmap = xh_u[..., :hw], xh_l[..., :hw], dmap[..., :hw]
  return ([xh_list[0],
           xh_u.reshape(n, hid, h, w),
           xh_l.reshape(n, hid, h, w)],
          dmap.reshape(n, 3, h, w))


# ----------------------------------------------------------------------------
# Parameter construction (inference BN folded into conv weights)
# ----------------------------------------------------------------------------
def _fold_bn(w, b, gamma, beta, mean, var, eps=1e-5):
  s = gamma / jnp.sqrt(var + eps)
  return w * s[None, :], (b - mean) * s + beta


def make_params(key, hid):
  ks = iter(jax.random.split(key, 64))
  conv_w = lambda ci, co: 0.2 * jax.random.normal(next(ks), (ci, co), jnp.float32)
  conv_b = lambda co: 0.1 * jax.random.normal(next(ks), (co,), jnp.float32)

  def bn(c):
    gamma = 1.0 + 0.1 * jax.random.normal(next(ks), (c,), jnp.float32)
    beta = 0.1 * jax.random.normal(next(ks), (c,), jnp.float32)
    mean = 0.1 * jax.random.normal(next(ks), (c,), jnp.float32)
    var = 1.0 + 0.1 * jnp.abs(jax.random.normal(next(ks), (c,), jnp.float32))
    return gamma, beta, mean, var

  p = {}
  p["wfh1"], p["bfh1"] = _fold_bn(conv_w(3 * hid, hid), conv_b(hid), *bn(hid))
  p["wfh2"], p["bfh2"] = conv_w(hid, 3), conv_b(3)               # Decomp_att c2
  p["wdec"], p["bdec"] = _fold_bn(conv_w(hid, hid), jnp.zeros((hid,)), *bn(hid))
  p["wcu"], p["bcu"] = _fold_bn(conv_w(hid, hid), jnp.zeros((hid,)), *bn(hid))
  p["wcl"], p["bcl"] = _fold_bn(conv_w(hid, hid), jnp.zeros((hid,)), *bn(hid))
  p["wgu"], p["bgu"] = conv_w(2 * hid, 2 * hid), conv_b(2 * hid)  # GRU gates
  p["wnu"], p["bnu"] = conv_w(2 * hid, hid), conv_b(hid)          # GRU cand
  p["wgl"], p["bgl"] = conv_w(2 * hid, 2 * hid), conv_b(2 * hid)
  p["wnl"], p["bnl"] = conv_w(2 * hid, hid), conv_b(hid)
  return p


# ----------------------------------------------------------------------------
# Pure-JAX reference (same math, bf16 rounding at the MXU boundary, no Pallas)
# ----------------------------------------------------------------------------
def _nchw_to_mc(x):
  return jnp.transpose(x, (0, 2, 3, 1)).reshape(-1, x.shape[1])


def _bdot(a, b):
  return jnp.dot(a.astype(jnp.bfloat16), b.astype(jnp.bfloat16),
                 preferred_element_type=jnp.float32)


def half_graph_ref(xf, xh0, xh1, xh2, xp, attu, attl, p, hid):
  relu = lambda v: jnp.maximum(v, 0.0)
  t = relu(_bdot(jnp.concatenate([xf, xh1, xh2], -1), p["wfh1"]) + p["bfh1"])
  dmap = _bdot(t, p["wfh2"]) + p["bfh2"]
  att = jax.nn.softmax(dmap, axis=-1)
  dec0 = relu(_bdot(xf * att[:, 1:2] + xh1, p["wdec"]) + p["bdec"])
  dec1 = relu(_bdot(xf * att[:, 2:3] + xh2, p["wdec"]) + p["bdec"])
  comp_u = sum(relu(_bdot(xh0 + xp[i] * attu, p["wcu"]) + p["bcu"])
               for i in range(4))
  comp_l = sum(relu(_bdot(xh1 + xp[i] * attl, p["wcl"]) + p["bcl"])
               for i in (4, 5))

  def gru(msg, hcur, wg, bg, wn, bn):
    g = _bdot(jnp.concatenate([msg, hcur], -1), wg) + bg
    r, z = jax.nn.sigmoid(g[:, :hid]), jax.nn.sigmoid(g[:, hid:])
    cand = jnp.tanh(_bdot(jnp.concatenate([msg, r * hcur], -1), wn) + bn)
    return (1.0 - z) * hcur + z * cand

  xh_u = gru(dec0 + comp_u, xh0, p["wgu"], p["bgu"], p["wnu"], p["bnu"])
  xh_l = gru(dec1 + comp_l, xh1, p["wgl"], p["bgl"], p["wnl"], p["bnl"])
  return xh_u, xh_l, dmap


if __name__ == "__main__":
  N, HID, H, W = 2, 16, 16, 16   # hidden_dim=16, spatial 16x16, batch 2
  key = jax.random.PRNGKey(0)
  k_par, k_in = jax.random.split(key)
  params = make_params(k_par, HID)

  ks = iter(jax.random.split(k_in, 32))
  feat = lambda: jax.random.normal(next(ks), (N, HID, H, W), jnp.float32)
  amap = lambda: jax.nn.sigmoid(
      jax.random.normal(next(ks), (N, 1, H, W), jnp.float32))

  xf_list = [feat(), feat()]                 # only index 1 is used
  xh_list = [feat(), feat(), feat()]         # cls_h = 3 half-level features
  xp_list = [feat() for _ in range(6)]       # parts 1..6
  p_att_list = [amap() for _ in range(7)]    # indices 1..6 are used
  f_att_list = [amap(), amap()]              # unused by forward
  h_att_list = [amap(), amap(), amap()]      # unused by forward

  xh_new, decomp_att_map = half_graph_forward(
      xf_list, xh_list, xp_list, f_att_list, h_att_list, p_att_list, params)
  jax.block_until_ready(xh_new)
  jax.block_until_ready(decomp_att_map)

  # correctness check against a pure-JAX reference with the same bf16-at-MXU
  # rounding (weights bf16, activations bf16 at the dot, f32 everywhere else).
  xf_mc = _nchw_to_mc(xf_list[1])
  xh0_mc, xh1_mc, xh2_mc = (_nchw_to_mc(x) for x in xh_list)
  xp_mc = [_nchw_to_mc(x) for x in xp_list]
  attu_mc = sum(_nchw_to_mc(p_att_list[i]) for i in (1, 2, 3, 4))
  attl_mc = sum(_nchw_to_mc(p_att_list[i]) for i in (5, 6))
  ref_u, ref_l, ref_m = half_graph_ref(xf_mc, xh0_mc, xh1_mc, xh2_mc, xp_mc,
                                       attu_mc, attl_mc, params, HID)
  for got, ref in ((_nchw_to_mc(xh_new[1]), ref_u),
                   (_nchw_to_mc(xh_new[2]), ref_l),
                   (_nchw_to_mc(decomp_att_map), ref_m)):
    err = float(jnp.max(jnp.abs(got - ref)))
    assert jnp.allclose(got, ref, rtol=1e-2, atol=1e-2), err

  print("KERNEL_OK")
</pallas_src>

<mosaic_0001>
module attributes {stable_mosaic.version = 11 : i64} {
  func.func @_half_graph_kernel(%arg0: i32, %arg1: i32, %arg2: memref<1x16x256xf32, #tpu.memory_space<vmem>>, %arg3: memref<1x16x256xf32, #tpu.memory_space<vmem>>, %arg4: memref<1x16x256xf32, #tpu.memory_space<vmem>>, %arg5: memref<1x16x256xf32, #tpu.memory_space<vmem>>, %arg6: memref<1x16x256xf32, #tpu.memory_space<vmem>>, %arg7: memref<1x16x256xf32, #tpu.memory_space<vmem>>, %arg8: memref<1x16x256xf32, #tpu.memory_space<vmem>>, %arg9: memref<1x16x256xf32, #tpu.memory_space<vmem>>, %arg10: memref<1x16x256xf32, #tpu.memory_space<vmem>>, %arg11: memref<1x16x256xf32, #tpu.memory_space<vmem>>, %arg12: memref<1x1x256xf32, #tpu.memory_space<vmem>>, %arg13: memref<1x1x256xf32, #tpu.memory_space<vmem>>, %arg14: memref<176x64xbf16, #tpu.memory_space<vmem>>, %arg15: memref<176x1xf32, #tpu.memory_space<vmem>>, %arg16: memref<1x16x256xf32, #tpu.memory_space<vmem>>, %arg17: memref<1x16x256xf32, #tpu.memory_space<vmem>>, %arg18: memref<1x3x256xf32, #tpu.memory_space<vmem>>) attributes {dimension_semantics = [#tpu.dimension_semantics<parallel>, #tpu.dimension_semantics<parallel>], iteration_bounds = array<i64: 2, 1>, scalar_prefetch = 0 : i64, scratch_operands = 0 : i64, tpu.core_type = #tpu.core_type<tc>, window_params = [{transform_indices = @transform_0, window_bounds = array<i64: 1, 16, 256>}, {transform_indices = @transform_1, window_bounds = array<i64: 1, 16, 256>}, {transform_indices = @transform_2, window_bounds = array<i64: 1, 16, 256>}, {transform_indices = @transform_3, window_bounds = array<i64: 1, 16, 256>}, {transform_indices = @transform_4, window_bounds = array<i64: 1, 16, 256>}, {transform_indices = @transform_5, window_bounds = array<i64: 1, 16, 256>}, {transform_indices = @transform_6, window_bounds = array<i64: 1, 16, 256>}, {transform_indices = @transform_7, window_bounds = array<i64: 1, 16, 256>}, {transform_indices = @transform_8, window_bounds = array<i64: 1, 16, 256>}, {transform_indices = @transform_9, window_bounds = array<i64: 1, 16, 256>}, {transform_indices = @transform_10, window_bounds = array<i64: 1, 1, 256>}, {transform_indices = @transform_11, window_bounds = array<i64: 1, 1, 256>}, {pipeline_mode = #tpu.pipeline_mode<synchronous>, transform_indices = @transform_12, window_bounds = array<i64: 176, 64>}, {pipeline_mode = #tpu.pipeline_mode<synchronous>, transform_indices = @transform_13, window_bounds = array<i64: 176, 1>}, {transform_indices = @transform_14, window_bounds = array<i64: 1, 16, 256>}, {transform_indices = @transform_15, window_bounds = array<i64: 1, 16, 256>}, {transform_indices = @transform_16, window_bounds = array<i64: 1, 3, 256>}]} {
    %c0 = arith.constant 0 : index
    %c0_0 = arith.constant 0 : index
    %c0_1 = arith.constant 0 : index
    %0 = vector.load %arg2[%c0, %c0_0, %c0_1] : memref<1x16x256xf32, #tpu.memory_space<vmem>>, vector<1x16x256xf32>
    %1 = vector.shape_cast %0 : vector<1x16x256xf32> to vector<16x256xf32>
    %c0_2 = arith.constant 0 : index
    %c0_3 = arith.constant 0 : index
    %c0_4 = arith.constant 0 : index
    %2 = vector.load %arg3[%c0_2, %c0_3, %c0_4] : memref<1x16x256xf32, #tpu.memory_space<vmem>>, vector<1x16x256xf32>
    %3 = vector.shape_cast %2 : vector<1x16x256xf32> to vector<16x256xf32>
    %c0_5 = arith.constant 0 : index
    %c0_6 = arith.constant 0 : index
    %c0_7 = arith.constant 0 : index
    %4 = vector.load %arg4[%c0_5, %c0_6, %c0_7] : memref<1x16x256xf32, #tpu.memory_space<vmem>>, vector<1x16x256xf32>
    %5 = vector.shape_cast %4 : vector<1x16x256xf32> to vector<16x256xf32>
    %c0_8 = arith.constant 0 : index
    %c0_9 = arith.constant 0 : index
    %c0_10 = arith.constant 0 : index
    %6 = vector.load %arg5[%c0_8, %c0_9, %c0_10] : memref<1x16x256xf32, #tpu.memory_space<vmem>>, vector<1x16x256xf32>
    %7 = vector.shape_cast %6 : vector<1x16x256xf32> to vector<16x256xf32>
    %c0_11 = arith.constant 0 : index
    %c0_12 = arith.constant 0 : index
    %c0_13 = arith.constant 0 : index
    %8 = vector.load %arg6[%c0_11, %c0_12, %c0_13] : memref<1x16x256xf32, #tpu.memory_space<vmem>>, vector<1x16x256xf32>
    %9 = vector.shape_cast %8 : vector<1x16x256xf32> to vector<16x256xf32>
    %c0_14 = arith.constant 0 : index
    %c0_15 = arith.constant 0 : index
    %c0_16 = arith.constant 0 : index
    %10 = vector.load %arg7[%c0_14, %c0_15, %c0_16] : memref<1x16x256xf32, #tpu.memory_space<vmem>>, vector<1x16x256xf32>
    %11 = vector.shape_cast %10 : vector<1x16x256xf32> to vector<16x256xf32>
    %c0_17 = arith.constant 0 : index
    %c0_18 = arith.constant 0 : index
    %c0_19 = arith.constant 0 : index
    %12 = vector.load %arg8[%c0_17, %c0_18, %c0_19] : memref<1x16x256xf32, #tpu.memory_space<vmem>>, vector<1x16x256xf32>
    %13 = vector.shape_cast %12 : vector<1x16x256xf32> to vector<16x256xf32>
    %c0_20 = arith.constant 0 : index
    %c0_21 = arith.constant 0 : index
    %c0_22 = arith.constant 0 : index
    %14 = vector.load %arg9[%c0_20, %c0_21, %c0_22] : memref<1x16x256xf32, #tpu.memory_space<vmem>>, vector<1x16x256xf32>
    %15 = vector.shape_cast %14 : vector<1x16x256xf32> to vector<16x256xf32>
    %c0_23 = arith.constant 0 : index
    %c0_24 = arith.constant 0 : index
    %c0_25 = arith.constant 0 : index
    %16 = vector.load %arg10[%c0_23, %c0_24, %c0_25] : memref<1x16x256xf32, #tpu.memory_space<vmem>>, vector<1x16x256xf32>
    %17 = vector.shape_cast %16 : vector<1x16x256xf32> to vector<16x256xf32>
    %c0_26 = arith.constant 0 : index
    %c0_27 = arith.constant 0 : index
    %c0_28 = arith.constant 0 : index
    %18 = vector.load %arg11[%c0_26, %c0_27, %c0_28] : memref<1x16x256xf32, #tpu.memory_space<vmem>>, vector<1x16x256xf32>
    %19 = vector.shape_cast %18 : vector<1x16x256xf32> to vector<16x256xf32>
    %20 = tpu.concatenate %1, %5, %7 in 0 : vector<16x256xf32>, vector<16x256xf32>, vector<16x256xf32> -> vector<48x256xf32>
    %21 = arith.truncf %20 : vector<48x256xf32> to vector<48x256xbf16>
    %c0_29 = arith.constant 0 : index
    %c0_30 = arith.constant 0 : index
    %22 = vector.load %arg14[%c0_29, %c0_30] : memref<176x64xbf16, #tpu.memory_space<vmem>>, vector<16x48xbf16>
    %c0_31 = arith.constant 0 : index
    %c0_32 = arith.constant 0 : index
    %23 = vector.load %arg15[%c0_31, %c0_32] : memref<176x1xf32, #tpu.memory_space<vmem>>, vector<16x1xf32>
    %cst = arith.constant dense<0.000000e+00> : vector<16x256xf32>
    %24 = tpu.matmul %22, %21, %cst {dimension_numbers = #tpu.dot_dimension_numbers<[1], [0], [0], [1], [0, 0, 1, 1], [], []>} : vector<16x48xbf16>, vector<48x256xbf16>, vector<16x256xf32> -> vector<16x256xf32>
    %25 = vector.broadcast %23 : vector<16x1xf32> to vector<16x256xf32>
    %26 = arith.addf %24, %25 : vector<16x256xf32>
    %cst_33 = arith.constant 0.000000e+00 : f32
    %27 = vector.broadcast %cst_33 : f32 to vector<16x256xf32>
    %28 = arith.maximumf %26, %27 : vector<16x256xf32>
    %29 = arith.truncf %28 : vector<16x256xf32> to vector<16x256xbf16>
    %c16 = arith.constant 16 : index
    %c0_34 = arith.constant 0 : index
    %30 = vector.load %arg14[%c16, %c0_34] : memref<176x64xbf16, #tpu.memory_space<vmem>>, vector<3x16xbf16>
    %c16_35 = arith.constant 16 : index
    %c0_36 = arith.constant 0 : index
    %31 = vector.load %arg15[%c16_35, %c0_36] : memref<176x1xf32, #tpu.memory_space<vmem>>, vector<3x1xf32>
    %cst_37 = arith.constant dense<0.000000e+00> : vector<3x256xf32>
    %32 = tpu.matmul %30, %29, %cst_37 {dimension_numbers = #tpu.dot_dimension_numbers<[1], [0], [0], [1], [0, 0, 1, 1], [], []>} : vector<3x16xbf16>, vector<16x256xbf16>, vector<3x256xf32> -> vector<3x256xf32>
    %33 = vector.broadcast %31 : vector<3x1xf32> to vector<3x256xf32>
    %34 = arith.addf %32, %33 : vector<3x256xf32>
    %cst_38 = arith.constant dense<0xFF800000> : vector<256xf32>
    %35 = vector.multi_reduction <maximumf>, %34, %cst_38 [0] : vector<3x256xf32> to vector<256xf32>
    %36 = vector.shape_cast %35 : vector<256xf32> to vector<1x256xf32>
    %37 = vector.broadcast %36 : vector<1x256xf32> to vector<3x256xf32>
    %38 = arith.subf %34, %37 : vector<3x256xf32>
    %39 = math.exp %38 : vector<3x256xf32>
    %cst_39 = arith.constant dense<0.000000e+00> : vector<256xf32>
    %40 = vector.multi_reduction <add>, %39, %cst_39 [0] : vector<3x256xf32> to vector<256xf32>
    %41 = vector.shape_cast %40 : vector<256xf32> to vector<1x256xf32>
    %42 = vector.broadcast %41 : vector<1x256xf32> to vector<3x256xf32>
    %43 = arith.divf %39, %42 : vector<3x256xf32>
    %44 = vector.extract_strided_slice %43 {offsets = [1, 0], sizes = [1, 256], strides = [1, 1]} : vector<3x256xf32> to vector<1x256xf32>
    %45 = vector.extract_strided_slice %43 {offsets = [2, 0], sizes = [1, 256], strides = [1, 1]} : vector<3x256xf32> to vector<1x256xf32>
    %46 = vector.broadcast %44 : vector<1x256xf32> to vector<16x256xf32>
    %47 = arith.mulf %1, %46 : vector<16x256xf32>
    %48 = arith.addf %47, %5 : vector<16x256xf32>
    %49 = arith.truncf %48 : vector<16x256xf32> to vector<16x256xbf16>
    %50 = vector.broadcast %45 : vector<1x256xf32> to vector<16x256xf32>
    %51 = arith.mulf %1, %50 : vector<16x256xf32>
    %52 = arith.addf %51, %7 : vector<16x256xf32>
    %53 = arith.truncf %52 : vector<16x256xf32> to vector<16x256xbf16>
    %54 = tpu.concatenate %49, %53 in 1 : vector<16x256xbf16>, vector<16x256xbf16> -> vector<16x512xbf16>
    %c32 = arith.constant 32 : index
    %c0_40 = arith.constant 0 : index
    %55 = vector.load %arg14[%c32, %c0_40] : memref<176x64xbf16, #tpu.memory_space<vmem>>, vector<16x16xbf16>
    %c32_41 = arith.constant 32 : index
    %c0_42 = arith.constant 0 : index
    %56 = vector.load %arg15[%c32_41, %c0_42] : memref<176x1xf32, #tpu.memory_space<vmem>>, vector<16x1xf32>
    %cst_43 = arith.constant dense<0.000000e+00> : vector<16x512xf32>
    %57 = tpu.matmul %55, %54, %cst_43 {dimension_numbers = #tpu.dot_dimension_numbers<[1], [0], [0], [1], [0, 0, 1, 1], [], []>} : vector<16x16xbf16>, vector<16x512xbf16>, vector<16x512xf32> -> vector<16x512xf32>
    %58 = vector.broadcast %56 : vector<16x1xf32> to vector<16x512xf32>
    %59 = arith.addf %57, %58 : vector<16x512xf32>
    %cst_44 = arith.constant 0.000000e+00 : f32
    %60 = vector.broadcast %cst_44 : f32 to vector<16x512xf32>
    %61 = arith.maximumf %59, %60 : vector<16x512xf32>
    %62 = vector.extract_strided_slice %61 {offsets = [0, 0], sizes = [16, 256], strides = [1, 1]} : vector<16x512xf32> to vector<16x256xf32>
    %63 = vector.extract_strided_slice %61 {offsets = [0, 256], sizes = [16, 256], strides = [1, 1]} : vector<16x512xf32> to vector<16x256xf32>
    %c0_45 = arith.constant 0 : index
    %c0_46 = arith.constant 0 : index
    %c0_47 = arith.constant 0 : index
    %64 = vector.load %arg12[%c0_45, %c0_46, %c0_47] : memref<1x1x256xf32, #tpu.memory_space<vmem>>, vector<1x1x256xf32>
    %65 = vector.shape_cast %64 : vector<1x1x256xf32> to vector<1x256xf32>
    %c0_48 = arith.constant 0 : index
    %c0_49 = arith.constant 0 : index
    %c0_50 = arith.constant 0 : index
    %66 = vector.load %arg13[%c0_48, %c0_49, %c0_50] : memref<1x1x256xf32, #tpu.memory_space<vmem>>, vector<1x1x256xf32>
    %67 = vector.shape_cast %66 : vector<1x1x256xf32> to vector<1x256xf32>
    %68 = vector.broadcast %65 : vector<1x256xf32> to vector<16x256xf32>
    %69 = arith.mulf %9, %68 : vector<16x256xf32>
    %70 = arith.addf %3, %69 : vector<16x256xf32>
    %71 = arith.truncf %70 : vector<16x256xf32> to vector<16x256xbf16>
    %72 = vector.broadcast %65 : vector<1x256xf32> to vector<16x256xf32>
    %73 = arith.mulf %11, %72 : vector<16x256xf32>
    %74 = arith.addf %3, %73 : vector<16x256xf32>
    %75 = arith.truncf %74 : vector<16x256xf32> to vector<16x256xbf16>
    %76 = vector.broadcast %65 : vector<1x256xf32> to vector<16x256xf32>
    %77 = arith.mulf %13, %76 : vector<16x256xf32>
    %78 = arith.addf %3, %77 : vector<16x256xf32>
    %79 = arith.truncf %78 : vector<16x256xf32> to vector<16x256xbf16>
    %80 = vector.broadcast %65 : vector<1x256xf32> to vector<16x256xf32>
    %81 = arith.mulf %15, %80 : vector<16x256xf32>
    %82 = arith.addf %3, %81 : vector<16x256xf32>
    %83 = arith.truncf %82 : vector<16x256xf32> to vector<16x256xbf16>
    %84 = tpu.concatenate %71, %75, %79, %83 in 1 : vector<16x256xbf16>, vector<16x256xbf16>, vector<16x256xbf16>, vector<16x256xbf16> -> vector<16x1024xbf16>
    %c48 = arith.constant 48 : index
    %c0_51 = arith.constant 0 : index
    %85 = vector.load %arg14[%c48, %c0_51] : memref<176x64xbf16, #tpu.memory_space<vmem>>, vector<16x16xbf16>
    %c48_52 = arith.constant 48 : index
    %c0_53 = arith.constant 0 : index
    %86 = vector.load %arg15[%c48_52, %c0_53] : memref<176x1xf32, #tpu.memory_space<vmem>>, vector<16x1xf32>
    %cst_54 = arith.constant dense<0.000000e+00> : vector<16x1024xf32>
    %87 = tpu.matmul %85, %84, %cst_54 {dimension_numbers = #tpu.dot_dimension_numbers<[1], [0], [0], [1], [0, 0, 1, 1], [], []>} : vector<16x16xbf16>, vector<16x1024xbf16>, vector<16x1024xf32> -> vector<16x1024xf32>
    %88 = vector.broadcast %86 : vector<16x1xf32> to vector<16x1024xf32>
    %89 = arith.addf %87, %88 : vector<16x1024xf32>
    %cst_55 = arith.constant 0.000000e+00 : f32
    %90 = vector.broadcast %cst_55 : f32 to vector<16x1024xf32>
    %91 = arith.maximumf %89, %90 : vector<16x1024xf32>
    %92 = vector.extract_strided_slice %91 {offsets = [0, 0], sizes = [16, 256], strides = [1, 1]} : vector<16x1024xf32> to vector<16x256xf32>
    %93 = vector.extract_strided_slice %91 {offsets = [0, 256], sizes = [16, 256], strides = [1, 1]} : vector<16x1024xf32> to vector<16x256xf32>
    %94 = arith.addf %92, %93 : vector<16x256xf32>
    %95 = vector.extract_strided_slice %91 {offsets = [0, 512], sizes = [16, 256], strides = [1, 1]} : vector<16x1024xf32> to vector<16x256xf32>
    %96 = arith.addf %94, %95 : vector<16x256xf32>
    %97 = vector.extract_strided_slice %91 {offsets = [0, 768], sizes = [16, 256], strides = [1, 1]} : vector<16x1024xf32> to vector<16x256xf32>
    %98 = arith.addf %96, %97 : vector<16x256xf32>
    %99 = vector.broadcast %67 : vector<1x256xf32> to vector<16x256xf32>
    %100 = arith.mulf %17, %99 : vector<16x256xf32>
    %101 = arith.addf %5, %100 : vector<16x256xf32>
    %102 = arith.truncf %101 : vector<16x256xf32> to vector<16x256xbf16>
    %103 = vector.broadcast %67 : vector<1x256xf32> to vector<16x256xf32>
    %104 = arith.mulf %19, %103 : vector<16x256xf32>
    %105 = arith.addf %5, %104 : vector<16x256xf32>
    %106 = arith.truncf %105 : vector<16x256xf32> to vector<16x256xbf16>
    %107 = tpu.concatenate %102, %106 in 1 : vector<16x256xbf16>, vector<16x256xbf16> -> vector<16x512xbf16>
    %c64 = arith.constant 64 : index
    %c0_56 = arith.constant 0 : index
    %108 = vector.load %arg14[%c64, %c0_56] : memref<176x64xbf16, #tpu.memory_space<vmem>>, vector<16x16xbf16>
    %c64_57 = arith.constant 64 : index
    %c0_58 = arith.constant 0 : index
    %109 = vector.load %arg15[%c64_57, %c0_58] : memref<176x1xf32, #tpu.memory_space<vmem>>, vector<16x1xf32>
    %cst_59 = arith.constant dense<0.000000e+00> : vector<16x512xf32>
    %110 = tpu.matmul %108, %107, %cst_59 {dimension_numbers = #tpu.dot_dimension_numbers<[1], [0], [0], [1], [0, 0, 1, 1], [], []>} : vector<16x16xbf16>, vector<16x512xbf16>, vector<16x512xf32> -> vector<16x512xf32>
    %111 = vector.broadcast %109 : vector<16x1xf32> to vector<16x512xf32>
    %112 = arith.addf %110, %111 : vector<16x512xf32>
    %cst_60 = arith.constant 0.000000e+00 : f32
    %113 = vector.broadcast %cst_60 : f32 to vector<16x512xf32>
    %114 = arith.maximumf %112, %113 : vector<16x512xf32>
    %115 = vector.extract_strided_slice %114 {offsets = [0, 0], sizes = [16, 256], strides = [1, 1]} : vector<16x512xf32> to vector<16x256xf32>
    %116 = vector.extract_strided_slice %114 {offsets = [0, 256], sizes = [16, 256], strides = [1, 1]} : vector<16x512xf32> to vector<16x256xf32>
    %117 = arith.addf %115, %116 : vector<16x256xf32>
    %118 = arith.addf %62, %98 : vector<16x256xf32>
    %119 = arith.addf %63, %117 : vector<16x256xf32>
    %120 = arith.truncf %118 : vector<16x256xf32> to vector<16x256xbf16>
    %121 = arith.truncf %119 : vector<16x256xf32> to vector<16x256xbf16>
    %122 = arith.truncf %3 : vector<16x256xf32> to vector<16x256xbf16>
    %123 = arith.truncf %5 : vector<16x256xf32> to vector<16x256xbf16>
    %124 = tpu.concatenate %120, %122, %121, %123 in 0 : vector<16x256xbf16>, vector<16x256xbf16>, vector<16x256xbf16>, vector<16x256xbf16> -> vector<64x256xbf16>
    %c80 = arith.constant 80 : index
    %c0_61 = arith.constant 0 : index
    %125 = vector.load %arg14[%c80, %c0_61] : memref<176x64xbf16, #tpu.memory_space<vmem>>, vector<64x64xbf16>
    %c80_62 = arith.constant 80 : index
    %c0_63 = arith.constant 0 : index
    %126 = vector.load %arg15[%c80_62, %c0_63] : memref<176x1xf32, #tpu.memory_space<vmem>>, vector<64x1xf32>
    %cst_64 = arith.constant dense<0.000000e+00> : vector<64x256xf32>
    %127 = tpu.matmul %125, %124, %cst_64 {dimension_numbers = #tpu.dot_dimension_numbers<[1], [0], [0], [1], [0, 0, 1, 1], [], []>} : vector<64x64xbf16>, vector<64x256xbf16>, vector<64x256xf32> -> vector<64x256xf32>
    %128 = vector.broadcast %126 : vector<64x1xf32> to vector<64x256xf32>
    %129 = arith.addf %127, %128 : vector<64x256xf32>
    %130 = vector.extract_strided_slice %129 {offsets = [0, 0], sizes = [16, 256], strides = [1, 1]} : vector<64x256xf32> to vector<16x256xf32>
    %131 = arith.negf %130 : vector<16x256xf32>
    %132 = math.exp %131 : vector<16x256xf32>
    %cst_65 = arith.constant 1.000000e+00 : f32
    %133 = vector.broadcast %cst_65 : f32 to vector<16x256xf32>
    %134 = arith.addf %133, %132 : vector<16x256xf32>
    %135 = arith.divf %133, %134 : vector<16x256xf32>
    %136 = vector.extract_strided_slice %129 {offsets = [16, 0], sizes = [16, 256], strides = [1, 1]} : vector<64x256xf32> to vector<16x256xf32>
    %137 = arith.negf %136 : vector<16x256xf32>
    %138 = math.exp %137 : vector<16x256xf32>
    %cst_66 = arith.constant 1.000000e+00 : f32
    %139 = vector.broadcast %cst_66 : f32 to vector<16x256xf32>
    %140 = arith.addf %139, %138 : vector<16x256xf32>
    %141 = arith.divf %139, %140 : vector<16x256xf32>
    %142 = vector.extract_strided_slice %129 {offsets = [32, 0], sizes = [16, 256], strides = [1, 1]} : vector<64x256xf32> to vector<16x256xf32>
    %143 = arith.negf %142 : vector<16x256xf32>
    %144 = math.exp %143 : vector<16x256xf32>
    %cst_67 = arith.constant 1.000000e+00 : f32
    %145 = vector.broadcast %cst_67 : f32 to vector<16x256xf32>
    %146 = arith.addf %145, %144 : vector<16x256xf32>
    %147 = arith.divf %145, %146 : vector<16x256xf32>
    %148 = vector.extract_strided_slice %129 {offsets = [48, 0], sizes = [16, 256], strides = [1, 1]} : vector<64x256xf32> to vector<16x256xf32>
    %149 = arith.negf %148 : vector<16x256xf32>
    %150 = math.exp %149 : vector<16x256xf32>
    %cst_68 = arith.constant 1.000000e+00 : f32
    %151 = vector.broadcast %cst_68 : f32 to vector<16x256xf32>
    %152 = arith.addf %151, %150 : vector<16x256xf32>
    %153 = arith.divf %151, %152 : vector<16x256xf32>
    %154 = arith.mulf %135, %3 : vector<16x256xf32>
    %155 = arith.truncf %154 : vector<16x256xf32> to vector<16x256xbf16>
    %156 = arith.mulf %147, %5 : vector<16x256xf32>
    %157 = arith.truncf %156 : vector<16x256xf32> to vector<16x256xbf16>
    %158 = tpu.concatenate %120, %155, %121, %157 in 0 : vector<16x256xbf16>, vector<16x256xbf16>, vector<16x256xbf16>, vector<16x256xbf16> -> vector<64x256xbf16>
    %c144 = arith.constant 144 : index
    %c0_69 = arith.constant 0 : index
    %159 = vector.load %arg14[%c144, %c0_69] : memref<176x64xbf16, #tpu.memory_space<vmem>>, vector<32x64xbf16>
    %c144_70 = arith.constant 144 : index
    %c0_71 = arith.constant 0 : index
    %160 = vector.load %arg15[%c144_70, %c0_71] : memref<176x1xf32, #tpu.memory_space<vmem>>, vector<32x1xf32>
    %cst_72 = arith.constant dense<0.000000e+00> : vector<32x256xf32>
    %161 = tpu.matmul %159, %158, %cst_72 {dimension_numbers = #tpu.dot_dimension_numbers<[1], [0], [0], [1], [0, 0, 1, 1], [], []>} : vector<32x64xbf16>, vector<64x256xbf16>, vector<32x256xf32> -> vector<32x256xf32>
    %162 = vector.broadcast %160 : vector<32x1xf32> to vector<32x256xf32>
    %163 = arith.addf %161, %162 : vector<32x256xf32>
    %164 = math.tanh %163 : vector<32x256xf32>
    %cst_73 = arith.constant 1.000000e+00 : f32
    %165 = vector.broadcast %cst_73 : f32 to vector<16x256xf32>
    %166 = arith.subf %165, %141 : vector<16x256xf32>
    %167 = arith.mulf %166, %3 : vector<16x256xf32>
    %168 = vector.extract_strided_slice %164 {offsets = [0, 0], sizes = [16, 256], strides = [1, 1]} : vector<32x256xf32> to vector<16x256xf32>
    %169 = arith.mulf %141, %168 : vector<16x256xf32>
    %170 = arith.addf %167, %169 : vector<16x256xf32>
    %c0_74 = arith.constant 0 : index
    %c0_75 = arith.constant 0 : index
    %c0_76 = arith.constant 0 : index
    %171 = vector.load %arg16[%c0_74, %c0_75, %c0_76] : memref<1x16x256xf32, #tpu.memory_space<vmem>>, vector<1x16x256xf32>
    %172 = vector.shape_cast %171 : vector<1x16x256xf32> to vector<16x256xf32>
    %173 = vector.shape_cast %170 : vector<16x256xf32> to vector<1x16x256xf32>
    tpu.vector_store %arg16[%c0_74, %c0_75, %c0_76], %173 {strides = array<i32>} : memref<1x16x256xf32, #tpu.memory_space<vmem>>, vector<1x16x256xf32>,
    %cst_77 = arith.constant 1.000000e+00 : f32
    %174 = vector.broadcast %cst_77 : f32 to vector<16x256xf32>
    %175 = arith.subf %174, %153 : vector<16x256xf32>
    %176 = arith.mulf %175, %5 : vector<16x256xf32>
    %177 = vector.extract_strided_slice %164 {offsets = [16, 0], sizes = [16, 256], strides = [1, 1]} : vector<32x256xf32> to vector<16x256xf32>
    %178 = arith.mulf %153, %177 : vector<16x256xf32>
    %179 = arith.addf %176, %178 : vector<16x256xf32>
    %c0_78 = arith.constant 0 : index
    %c0_79 = arith.constant 0 : index
    %c0_80 = arith.constant 0 : index
    %180 = vector.load %arg17[%c0_78, %c0_79, %c0_80] : memref<1x16x256xf32, #tpu.memory_space<vmem>>, vector<1x16x256xf32>
    %181 = vector.shape_cast %180 : vector<1x16x256xf32> to vector<16x256xf32>
    %182 = vector.shape_cast %179 : vector<16x256xf32> to vector<1x16x256xf32>
    tpu.vector_store %arg17[%c0_78, %c0_79, %c0_80], %182 {strides = array<i32>} : memref<1x16x256xf32, #tpu.memory_space<vmem>>, vector<1x16x256xf32>,
    %c0_81 = arith.constant 0 : index
    %c0_82 = arith.constant 0 : index
    %c0_83 = arith.constant 0 : index
    %183 = vector.load %arg18[%c0_81, %c0_82, %c0_83] : memref<1x3x256xf32, #tpu.memory_space<vmem>>, vector<1x3x256xf32>
    %184 = vector.shape_cast %183 : vector<1x3x256xf32> to vector<3x256xf32>
    %185 = vector.shape_cast %34 : vector<3x256xf32> to vector<1x3x256xf32>
    tpu.vector_store %arg18[%c0_81, %c0_82, %c0_83], %185 {strides = array<i32>} : memref<1x3x256xf32, #tpu.memory_space<vmem>>, vector<1x3x256xf32>,
    return
  }
  func.func @transform_0(%arg0: i32, %arg1: i32) -> (i32, i32, i32) {
    %c0_i32 = arith.constant 0 : i32
    %c0_i32_0 = arith.constant 0 : i32
    return %arg0, %c0_i32, %arg1 : i32, i32, i32
  }
  func.func @transform_1(%arg0: i32, %arg1: i32) -> (i32, i32, i32) {
    %c0_i32 = arith.constant 0 : i32
    %c0_i32_0 = arith.constant 0 : i32
    return %arg0, %c0_i32, %arg1 : i32, i32, i32
  }
  func.func @transform_2(%arg0: i32, %arg1: i32) -> (i32, i32, i32) {
    %c0_i32 = arith.constant 0 : i32
    %c0_i32_0 = arith.constant 0 : i32
    return %arg0, %c0_i32, %arg1 : i32, i32, i32
  }
  func.func @transform_3(%arg0: i32, %arg1: i32) -> (i32, i32, i32) {
    %c0_i32 = arith.constant 0 : i32
    %c0_i32_0 = arith.constant 0 : i32
    return %arg0, %c0_i32, %arg1 : i32, i32, i32
  }
  func.func @transform_4(%arg0: i32, %arg1: i32) -> (i32, i32, i32) {
    %c0_i32 = arith.constant 0 : i32
    %c0_i32_0 = arith.constant 0 : i32
    return %arg0, %c0_i32, %arg1 : i32, i32, i32
  }
  func.func @transform_5(%arg0: i32, %arg1: i32) -> (i32, i32, i32) {
    %c0_i32 = arith.constant 0 : i32
    %c0_i32_0 = arith.constant 0 : i32
    return %arg0, %c0_i32, %arg1 : i32, i32, i32
  }
  func.func @transform_6(%arg0: i32, %arg1: i32) -> (i32, i32, i32) {
    %c0_i32 = arith.constant 0 : i32
    %c0_i32_0 = arith.constant 0 : i32
    return %arg0, %c0_i32, %arg1 : i32, i32, i32
  }
  func.func @transform_7(%arg0: i32, %arg1: i32) -> (i32, i32, i32) {
    %c0_i32 = arith.constant 0 : i32
    %c0_i32_0 = arith.constant 0 : i32
    return %arg0, %c0_i32, %arg1 : i32, i32, i32
  }
  func.func @transform_8(%arg0: i32, %arg1: i32) -> (i32, i32, i32) {
    %c0_i32 = arith.constant 0 : i32
    %c0_i32_0 = arith.constant 0 : i32
    return %arg0, %c0_i32, %arg1 : i32, i32, i32
  }
  func.func @transform_9(%arg0: i32, %arg1: i32) -> (i32, i32, i32) {
    %c0_i32 = arith.constant 0 : i32
    %c0_i32_0 = arith.constant 0 : i32
    return %arg0, %c0_i32, %arg1 : i32, i32, i32
  }
  func.func @transform_10(%arg0: i32, %arg1: i32) -> (i32, i32, i32) {
    %c0_i32 = arith.constant 0 : i32
    %c0_i32_0 = arith.constant 0 : i32
    return %arg0, %c0_i32, %arg1 : i32, i32, i32
  }
  func.func @transform_11(%arg0: i32, %arg1: i32) -> (i32, i32, i32) {
    %c0_i32 = arith.constant 0 : i32
    %c0_i32_0 = arith.constant 0 : i32
    return %arg0, %c0_i32, %arg1 : i32, i32, i32
  }
  func.func @transform_12(%arg0: i32, %arg1: i32) -> (i32, i32) {
    %c0_i32 = arith.constant 0 : i32
    %c0_i32_0 = arith.constant 0 : i32
    %c0_i32_1 = arith.constant 0 : i32
    return %c0_i32, %c0_i32_0 : i32, i32
  }
  func.func @transform_13(%arg0: i32, %arg1: i32) -> (i32, i32) {
    %c0_i32 = arith.constant 0 : i32
    %c0_i32_0 = arith.constant 0 : i32
    %c0_i32_1 = arith.constant 0 : i32
    return %c0_i32, %c0_i32_0 : i32, i32
  }
  func.func @transform_14(%arg0: i32, %arg1: i32) -> (i32, i32, i32) {
    %c0_i32 = arith.constant 0 : i32
    %c0_i32_0 = arith.constant 0 : i32
    return %arg0, %c0_i32, %arg1 : i32, i32, i32
  }
  func.func @transform_15(%arg0: i32, %arg1: i32) -> (i32, i32, i32) {
    %c0_i32 = arith.constant 0 : i32
    %c0_i32_0 = arith.constant 0 : i32
    return %arg0, %c0_i32, %arg1 : i32, i32, i32
  }
  func.func @transform_16(%arg0: i32, %arg1: i32) -> (i32, i32, i32) {
    %c0_i32 = arith.constant 0 : i32
    %c0_i32_0 = arith.constant 0 : i32
    return %arg0, %c0_i32, %arg1 : i32, i32, i32
  }
}

</mosaic_0001>

<llo_original>
// kernel: tpu_custom_call.1
$region0: #{tpu_custom_call.1}
  #allocation0 [shape = 'u32[]', space=smem, size = 0x4, offset = 0x4, fixed_abs, tag = 'smem constant byte address 0x4 - core index']
  #allocation1 [shape = 'u32[144,128]{1,0:T(1,128)}', space=vmem, size = 0x12000, scoped, tag = 'internal scratch']
  %s0 = inlined_call_operand.vmem [shape: f32[2,16,256], index: 0, kind: input, shape index: {}]
  %s1 = inlined_call_operand.vmem [shape: f32[2,16,256], index: 1, kind: input, shape index: {}]
  %s2 = inlined_call_operand.vmem [shape: f32[2,16,256], index: 2, kind: input, shape index: {}]
  %s3 = inlined_call_operand.vmem [shape: f32[2,16,256], index: 3, kind: input, shape index: {}]
  %s4 = inlined_call_operand.vmem [shape: f32[2,16,256], index: 4, kind: input, shape index: {}]
  %s5 = inlined_call_operand.hbm [shape: f32[2,16,256], index: 5, kind: input, shape index: {}]
  %s6 = inlined_call_operand.hbm [shape: f32[2,16,256], index: 6, kind: input, shape index: {}]
  %s7 = inlined_call_operand.hbm [shape: f32[2,16,256], index: 7, kind: input, shape index: {}]
  %s8 = inlined_call_operand.hbm [shape: f32[2,16,256], index: 8, kind: input, shape index: {}]
  %s9 = inlined_call_operand.hbm [shape: f32[2,16,256], index: 9, kind: input, shape index: {}]
  %s10 = inlined_call_operand.vmem [shape: f32[2,1,256], index: 10, kind: input, shape index: {}]
  %s11 = inlined_call_operand.vmem [shape: f32[2,1,256], index: 11, kind: input, shape index: {}]
  %s12 = inlined_call_operand.vmem [shape: bf16[176,64], index: 12, kind: input, shape index: {}]
  %s13 = inlined_call_operand.vmem [shape: f32[176,1], index: 13, kind: input, shape index: {}]
  %s14 = inlined_call_operand.hbm [shape: f32[2,16,256], index: 14, kind: output, shape index: {0}]
  %s15 = inlined_call_operand.hbm [shape: f32[2,16,256], index: 15, kind: output, shape index: {1}]
  %s16 = inlined_call_operand.vmem [shape: f32[2,3,256], index: 16, kind: output, shape index: {2}]
  %17 = xla_tuple %s14, %s15, %s16
  %s18 = sld [smem:[#allocation0]]
  $region125: #{tpu_custom_call.1} parent=0
    _
  %s20 = ssub.s32 1, %s18
  %s21 = scalar_select 0, %s20, %s18
  $region1: #{tpu_custom_call.1} parent=0
    #allocation2 [shape = 'u8[32768]{0}', space=vmem, size = 0x8000, scoped, tag = 'input window, operand 5']
    #allocation3 [shape = 's32[2]{0}', space=sflag, size = 0x8, scoped, tag = 'scoped memory for tpu_custom_call.1']
    #allocation4 [shape = 's32[2]{0}', space=sflag, size = 0x8, scoped, tag = 'scoped memory for tpu_custom_call.1']
    #allocation5 [shape = 'u8[32768]{0}', space=vmem, size = 0x8000, scoped, tag = 'input window, operand 6']
    #allocation6 [shape = 's32[2]{0}', space=sflag, size = 0x8, scoped, tag = 'scoped memory for tpu_custom_call.1']
    #allocation7 [shape = 'u8[32768]{0}', space=vmem, size = 0x8000, scoped, tag = 'input window, operand 7']
    #allocation8 [shape = 'u8[32768]{0}', space=vmem, size = 0x8000, scoped, tag = 'input window, operand 8']
    #allocation9 [shape = 's32[2]{0}', space=sflag, size = 0x8, scoped, tag = 'scoped memory for tpu_custom_call.1']
    #allocation10 [shape = 'u8[32768]{0}', space=vmem, size = 0x8000, scoped, tag = 'input window, operand 9']
    #allocation11 [shape = 'u8[32768]{0}', space=vmem, size = 0x8000, scoped, tag = 'output window, operand 0']
    #allocation12 [shape = 'u8[32768]{0}', space=vmem, size = 0x8000, scoped, tag = 'output window, operand 1']
    #allocation13 [shape = 's32[2]{0}', space=sflag, size = 0x8, scoped, tag = 'scoped memory for tpu_custom_call.1']
    %22 = vsyncpa [#allocation3], 0
    %s23 = scalar_lea.sflag [#allocation3], 1
    %24 = vsyncpa %s23, 0
    %25 = vsyncpa [#allocation6], 0
    %s26 = scalar_lea.sflag [#allocation6], 1
    %27 = vsyncpa %s26, 0
    %28 = vsyncpa [#allocation9], 0
    %s29 = scalar_lea.sflag [#allocation9], 1
    %30 = vsyncpa %s29, 0
    %31 = vsyncpa [#allocation4], 0
    %s32 = scalar_lea.sflag [#allocation4], 1
    %33 = vsyncpa %s32, 0
    %34 = vsyncpa [#allocation13], 0
    %s35 = scalar_lea.sflag [#allocation13], 1
    %36 = vsyncpa %s35, 0
    loop: start=0, step=1, limit=4
    $region2: #{tpu_custom_call.1} parent=1 // loop_pre_header
      _
    $region3: #{tpu_custom_call.1} parent=1 // loop_header
      %s38 = sphi 0, %s42
      %p39 = scmp.ge.s32.totalorder %s38, 4
      %s45 = sphi 0, %s57
      %s46 = sphi 0, %s53
      %s47 = sphi 0, %s45
      %s48 = sphi 0, %s46
      %s49 = sphi 0, %s47
      %s50 = sphi 0, %s48
      %s62 = sphi 0, %s64
      %s65 = sphi 0, %s62
      %s66 = sphi 0, %s65
      %s82 = sphi 0, %s66
      %s90 = sphi 0, %s92
      %s93 = sphi 0, %s90
      %s94 = sphi 0, %s93
      %s110 = sphi 0, %s94
      %s118 = sphi 0, %s120
      %s121 = sphi 0, %s118
      %s122 = sphi 0, %s121
      %s138 = sphi 0, %s122
      %s146 = sphi 0, %s148
      %s149 = sphi 0, %s146
      %s150 = sphi 0, %s149
      %s166 = sphi 0, %s150
      %s174 = sphi 0, %s176
      %s177 = sphi 0, %s174
      %s178 = sphi 0, %s177
      %s194 = sphi 0, %s178
      %s202 = sphi 0, %s204
      %s205 = sphi 0, %s202
      %s206 = sphi 0, %s205
      %s222 = sphi 0, %s206
      %s230 = sphi 0, %s232
      %s233 = sphi 0, %s230
      %s234 = sphi 0, %s233
      %s250 = sphi 0, %s234
      %s258 = sphi 0, %s260
      %s261 = sphi 0, %s258
      %s262 = sphi 0, %s261
      %s278 = sphi 0, %s262
      %s286 = sphi 0, %s288
      %s289 = sphi 0, %s286
      %s290 = sphi 0, %s289
      %s306 = sphi 0, %s290
      %s314 = sphi 0, %s316
      %s317 = sphi 0, %s314
      %s318 = sphi 0, %s317
      %s334 = sphi 0, %s318
      %s342 = sphi 0, %s344
      %s345 = sphi 0, %s342
      %s346 = sphi 0, %s345
      %s362 = sphi 0, %s346
      %s370 = sphi 0, %s372
      %s373 = sphi 0, %s370
      %s374 = sphi 0, %s373
      %s390 = sphi 0, %s374
      %s394 = sphi 0, %s394
      %s396 = sphi 0, %s394
      %s397 = sphi 0, %s396
      %s411 = sphi 0, %s397
      %s415 = sphi 0, %s415
      %s417 = sphi 0, %s415
      %s418 = sphi 0, %s417
      %s432 = sphi 0, %s418
      %s440 = sphi 0, %s442
      %s443 = sphi 0, %s440
      %s444 = sphi 0, %s443
      %s460 = sphi 0, %s444
      %s468 = sphi 0, %s470
      %s471 = sphi 0, %s468
      %s472 = sphi 0, %s471
      %s488 = sphi 0, %s472
      %s496 = sphi 0, %s498
      %s499 = sphi 0, %s496
      %s500 = sphi 0, %s499
      %s516 = sphi 0, %s500
    $region4: #{tpu_custom_call.1} parent=1 // loop_header_branch
      %41 = sbr.rel (%p39) target = $region8
    $region5: #{tpu_custom_call.1} parent=1 // loop_body
      %s43 = ssub.s32 %s38, 1
      %s44 = ssub.s32 %s38, 2
      %s51 = sadd.s32 1, %s46
      %p52 = scmp.ge.s32.totalorder %s51, 1
      %s53 = scalar_select %p52, 0, %s51
      %s54 = sadd.s32 1, %s45
      %s55 = scalar_select %p52, %s54, %s45
      %p56 = scmp.ge.s32.totalorder %s55, 2
      %s57 = scalar_select %p56, 0, %s55
      %s58 = ssub.s32 %s45, %s57
      %s59 = ssub.s32 %s46, %s53
      %s60 = sor.u32 %s58, %s59
      %p61 = scmp.eq.s32.totalorder %s60, 0
      %s63 = sadd.s32 %s62, 1
      %s64 = scalar_select %p61, %s62, %s63
      %p67 = pneg %p61
      %p68 = scmp.eq.s32.totalorder %s38, 1
      %p69 = por %p67, %p68
      %p70 = scmp.ne.s32.totalorder %s62, %s65
      %p71 = scmp.eq.s32.totalorder %s38, 0
      %p72 = por %p70, %p71
      %p73 = scmp.ne.s32.totalorder %s62, %s65
      %p74 = scmp.eq.s32.totalorder %s43, 1
      %p75 = por %p73, %p74
      %p76 = scmp.ne.s32.totalorder %s65, %s66
      %p77 = scmp.eq.s32.totalorder %s43, 0
      %p78 = por %p76, %p77
      %p79 = scmp.ne.s32.totalorder %s65, %s66
      %p80 = scmp.eq.s32.totalorder %s44, 1
      %p81 = por %p79, %p80
      %p83 = scmp.ne.s32.totalorder %s66, %s82
      %p84 = scmp.eq.s32.totalorder %s44, 0
      %p85 = por %p83, %p84
      %s86 = ssub.s32 %s45, %s57
      %s87 = ssub.s32 %s46, %s53
      %s88 = sor.u32 %s86, %s87
      %p89 = scmp.eq.s32.totalorder %s88, 0
      %s91 = sadd.s32 %s90, 1
      %s92 = scalar_select %p89, %s90, %s91
      %p95 = pneg %p89
      %p96 = scmp.eq.s32.totalorder %s38, 1
      %p97 = por %p95, %p96
      %p98 = scmp.ne.s32.totalorder %s90, %s93
      %p99 = scmp.eq.s32.totalorder %s38, 0
      %p100 = por %p98, %p99
      %p101 = scmp.ne.s32.totalorder %s90, %s93
      %p102 = scmp.eq.s32.totalorder %s43, 1
      %p103 = por %p101, %p102
      %p104 = scmp.ne.s32.totalorder %s93, %s94
      %p105 = scmp.eq.s32.totalorder %s43, 0
      %p106 = por %p104, %p105
      %p107 = scmp.ne.s32.totalorder %s93, %s94
      %p108 = scmp.eq.s32.totalorder %s44, 1
      %p109 = por %p107, %p108
      %p111 = scmp.ne.s32.totalorder %s94, %s110
      %p112 = scmp.eq.s32.totalorder %s44, 0
      %p113 = por %p111, %p112
      %s114 = ssub.s32 %s45, %s57
      %s115 = ssub.s32 %s46, %s53
      %s116 = sor.u32 %s114, %s115
      %p117 = scmp.eq.s32.totalorder %s116, 0
      %s119 = sadd.s32 %s118, 1
      %s120 = scalar_select %p117, %s118, %s119
      %p123 = pneg %p117
      %p124 = scmp.eq.s32.totalorder %s38, 1
      %p125 = por %p123, %p124
      %p126 = scmp.ne.s32.totalorder %s118, %s121
      %p127 = scmp.eq.s32.totalorder %s38, 0
      %p128 = por %p126, %p127
      %p129 = scmp.ne.s32.totalorder %s118, %s121
      %p130 = scmp.eq.s32.totalorder %s43, 1
      %p131 = por %p129, %p130
      %p132 = scmp.ne.s32.totalorder %s121, %s122
      %p133 = scmp.eq.s32.totalorder %s43, 0
      %p134 = por %p132, %p133
      %p135 = scmp.ne.s32.totalorder %s121, %s122
      %p136 = scmp.eq.s32.totalorder %s44, 1
      %p137 = por %p135, %p136
      %p139 = scmp.ne.s32.totalorder %s122, %s138
      %p140 = scmp.eq.s32.totalorder %s44, 0
      %p141 = por %p139, %p140
      %s142 = ssub.s32 %s45, %s57
      %s143 = ssub.s32 %s46, %s53
      %s144 = sor.u32 %s142, %s143
      %p145 = scmp.eq.s32.totalorder %s144, 0
      %s147 = sadd.s32 %s146, 1
      %s148 = scalar_select %p145, %s146, %s147
      %p151 = pneg %p145
      %p152 = scmp.eq.s32.totalorder %s38, 1
      %p153 = por %p151, %p152
      %p154 = scmp.ne.s32.totalorder %s146, %s149
      %p155 = scmp.eq.s32.totalorder %s38, 0
      %p156 = por %p154, %p155
      %p157 = scmp.ne.s32.totalorder %s146, %s149
      %p158 = scmp.eq.s32.totalorder %s43, 1
      %p159 = por %p157, %p158
      %p160 = scmp.ne.s32.totalorder %s149, %s150
      %p161 = scmp.eq.s32.totalorder %s43, 0
      %p162 = por %p160, %p161
      %p163 = scmp.ne.s32.totalorder %s149, %s150
      %p164 = scmp.eq.s32.totalorder %s44, 1
      %p165 = por %p163, %p164
      %p167 = scmp.ne.s32.totalorder %s150, %s166
      %p168 = scmp.eq.s32.totalorder %s44, 0
      %p169 = por %p167, %p168
      %s170 = ssub.s32 %s45, %s57
      %s171 = ssub.s32 %s46, %s53
      %s172 = sor.u32 %s170, %s171
      %p173 = scmp.eq.s32.totalorder %s172, 0
      %s175 = sadd.s32 %s174, 1
      %s176 = scalar_select %p173, %s174, %s175
      %p179 = pneg %p173
      %p180 = scmp.eq.s32.totalorder %s38, 1
      %p181 = por %p179, %p180
      %p182 = scmp.ne.s32.totalorder %s174, %s177
      %p183 = scmp.eq.s32.totalorder %s38, 0
      %p184 = por %p182, %p183
      %p185 = scmp.ne.s32.totalorder %s174, %s177
      %p186 = scmp.eq.s32.totalorder %s43, 1
      %p187 = por %p185, %p186
      %p188 = scmp.ne.s32.totalorder %s177, %s178
      %p189 = scmp.eq.s32.totalorder %s43, 0
      %p190 = por %p188, %p189
      %p191 = scmp.ne.s32.totalorder %s177, %s178
      %p192 = scmp.eq.s32.totalorder %s44, 1
      %p193 = por %p191, %p192
      %p195 = scmp.ne.s32.totalorder %s178, %s194
      %p196 = scmp.eq.s32.totalorder %s44, 0
      %p197 = por %p195, %p196
      %s198 = ssub.s32 %s45, %s57
      %s199 = ssub.s32 %s46, %s53
      %s200 = sor.u32 %s198, %s199
      %p201 = scmp.eq.s32.totalorder %s200, 0
      %s203 = sadd.s32 %s202, 1
      %s204 = scalar_select %p201, %s202, %s203
      %p207 = pneg %p201
      %p208 = scmp.eq.s32.totalorder %s38, 1
      %p209 = por %p207, %p208
      %p210 = scmp.ne.s32.totalorder %s202, %s205
      %p211 = scmp.eq.s32.totalorder %s38, 0
      %p212 = por %p210, %p211
      %p213 = scmp.ne.s32.totalorder %s202, %s205
      %p214 = scmp.eq.s32.totalorder %s43, 1
      %p215 = por %p213, %p214
      %p216 = scmp.ne.s32.totalorder %s205, %s206
      %p217 = scmp.eq.s32.totalorder %s43, 0
      %p218 = por %p216, %p217
      %p219 = scmp.ne.s32.totalorder %s205, %s206
      %p220 = scmp.eq.s32.totalorder %s44, 1
      %p221 = por %p219, %p220
      %p223 = scmp.ne.s32.totalorder %s206, %s222
      %p224 = scmp.eq.s32.totalorder %s44, 0
      %p225 = por %p223, %p224
      %s226 = ssub.s32 %s45, %s57
      %s227 = ssub.s32 %s46, %s53
      %s228 = sor.u32 %s226, %s227
      %p229 = scmp.eq.s32.totalorder %s228, 0
      %s231 = sadd.s32 %s230, 1
      %s232 = scalar_select %p229, %s230, %s231
      %p235 = pneg %p229
      %p236 = scmp.eq.s32.totalorder %s38, 1
      %p237 = por %p235, %p236
      %p238 = scmp.ne.s32.totalorder %s230, %s233
      %p239 = scmp.eq.s32.totalorder %s38, 0
      %p240 = por %p238, %p239
      %p241 = scmp.ne.s32.totalorder %s230, %s233
      %p242 = scmp.eq.s32.totalorder %s43, 1
      %p243 = por %p241, %p242
      %p244 = scmp.ne.s32.totalorder %s233, %s234
      %p245 = scmp.eq.s32.totalorder %s43, 0
      %p246 = por %p244, %p245
      %p247 = scmp.ne.s32.totalorder %s233, %s234
      %p248 = scmp.eq.s32.totalorder %s44, 1
      %p249 = por %p247, %p248
      %p251 = scmp.ne.s32.totalorder %s234, %s250
      %p252 = scmp.eq.s32.totalorder %s44, 0
      %p253 = por %p251, %p252
      %s254 = ssub.s32 %s45, %s57
      %s255 = ssub.s32 %s46, %s53
      %s256 = sor.u32 %s254, %s255
      %p257 = scmp.eq.s32.totalorder %s256, 0
      %s259 = sadd.s32 %s258, 1
      %s260 = scalar_select %p257, %s258, %s259
      %p263 = pneg %p257
      %p264 = scmp.eq.s32.totalorder %s38, 1
      %p265 = por %p263, %p264
      %p266 = scmp.ne.s32.totalorder %s258, %s261
      %p267 = scmp.eq.s32.totalorder %s38, 0
      %p268 = por %p266, %p267
      %p269 = scmp.ne.s32.totalorder %s258, %s261
      %p270 = scmp.eq.s32.totalorder %s43, 1
      %p271 = por %p269, %p270
      %p272 = scmp.ne.s32.totalorder %s261, %s262
      %p273 = scmp.eq.s32.totalorder %s43, 0
      %p274 = por %p272, %p273
      %p275 = scmp.ne.s32.totalorder %s261, %s262
      %p276 = scmp.eq.s32.totalorder %s44, 1
      %p277 = por %p275, %p276
      %p279 = scmp.ne.s32.totalorder %s262, %s278
      %p280 = scmp.eq.s32.totalorder %s44, 0
      %p281 = por %p279, %p280
      %s282 = ssub.s32 %s45, %s57
      %s283 = ssub.s32 %s46, %s53
      %s284 = sor.u32 %s282, %s283
      %p285 = scmp.eq.s32.totalorder %s284, 0
      %s287 = sadd.s32 %s286, 1
      %s288 = scalar_select %p285, %s286, %s287
      %p291 = pneg %p285
      %p292 = scmp.eq.s32.totalorder %s38, 1
      %p293 = por %p291, %p292
      %p294 = scmp.ne.s32.totalorder %s286, %s289
      %p295 = scmp.eq.s32.totalorder %s38, 0
      %p296 = por %p294, %p295
      %p297 = scmp.ne.s32.totalorder %s286, %s289
      %p298 = scmp.eq.s32.totalorder %s43, 1
      %p299 = por %p297, %p298
      %p300 = scmp.ne.s32.totalorder %s289, %s290
      %p301 = scmp.eq.s32.totalorder %s43, 0
      %p302 = por %p300, %p301
      %p303 = scmp.ne.s32.totalorder %s289, %s290
      %p304 = scmp.eq.s32.totalorder %s44, 1
      %p305 = por %p303, %p304
      %p307 = scmp.ne.s32.totalorder %s290, %s306
      %p308 = scmp.eq.s32.totalorder %s44, 0
      %p309 = por %p307, %p308
      %s310 = ssub.s32 %s45, %s57
      %s311 = ssub.s32 %s46, %s53
      %s312 = sor.u32 %s310, %s311
      %p313 = scmp.eq.s32.totalorder %s312, 0
      %s315 = sadd.s32 %s314, 1
      %s316 = scalar_select %p313, %s314, %s315
      %p319 = pneg %p313
      %p320 = scmp.eq.s32.totalorder %s38, 1
      %p321 = por %p319, %p320
      %p322 = scmp.ne.s32.totalorder %s314, %s317
      %p323 = scmp.eq.s32.totalorder %s38, 0
      %p324 = por %p322, %p323
      %p325 = scmp.ne.s32.totalorder %s314, %s317
      %p326 = scmp.eq.s32.totalorder %s43, 1
      %p327 = por %p325, %p326
      %p328 = scmp.ne.s32.totalorder %s317, %s318
      %p329 = scmp.eq.s32.totalorder %s43, 0
      %p330 = por %p328, %p329
      %p331 = scmp.ne.s32.totalorder %s317, %s318
      %p332 = scmp.eq.s32.totalorder %s44, 1
      %p333 = por %p331, %p332
      %p335 = scmp.ne.s32.totalorder %s318, %s334
      %p336 = scmp.eq.s32.totalorder %s44, 0
      %p337 = por %p335, %p336
      %s338 = ssub.s32 %s45, %s57
      %s339 = ssub.s32 %s46, %s53
      %s340 = sor.u32 %s338, %s339
      %p341 = scmp.eq.s32.totalorder %s340, 0
      %s343 = sadd.s32 %s342, 1
      %s344 = scalar_select %p341, %s342, %s343
      %p347 = pneg %p341
      %p348 = scmp.eq.s32.totalorder %s38, 1
      %p349 = por %p347, %p348
      %p350 = scmp.ne.s32.totalorder %s342, %s345
      %p351 = scmp.eq.s32.totalorder %s38, 0
      %p352 = por %p350, %p351
      %p353 = scmp.ne.s32.totalorder %s342, %s345
      %p354 = scmp.eq.s32.totalorder %s43, 1
      %p355 = por %p353, %p354
      %p356 = scmp.ne.s32.totalorder %s345, %s346
      %p357 = scmp.eq.s32.totalorder %s43, 0
      %p358 = por %p356, %p357
      %p359 = scmp.ne.s32.totalorder %s345, %s346
      %p360 = scmp.eq.s32.totalorder %s44, 1
      %p361 = por %p359, %p360
      %p363 = scmp.ne.s32.totalorder %s346, %s362
      %p364 = scmp.eq.s32.totalorder %s44, 0
      %p365 = por %p363, %p364
      %s366 = ssub.s32 %s45, %s57
      %s367 = ssub.s32 %s46, %s53
      %s368 = sor.u32 %s366, %s367
      %p369 = scmp.eq.s32.totalorder %s368, 0
      %s371 = sadd.s32 %s370, 1
      %s372 = scalar_select %p369, %s370, %s371
      %p375 = pneg %p369
      %p376 = scmp.eq.s32.totalorder %s38, 1
      %p377 = por %p375, %p376
      %p378 = scmp.ne.s32.totalorder %s370, %s373
      %p379 = scmp.eq.s32.totalorder %s38, 0
      %p380 = por %p378, %p379
      %p381 = scmp.ne.s32.totalorder %s370, %s373
      %p382 = scmp.eq.s32.totalorder %s43, 1
      %p383 = por %p381, %p382
      %p384 = scmp.ne.s32.totalorder %s373, %s374
      %p385 = scmp.eq.s32.totalorder %s43, 0
      %p386 = por %p384, %p385
      %p387 = scmp.ne.s32.totalorder %s373, %s374
      %p388 = scmp.eq.s32.totalorder %s44, 1
      %p389 = por %p387, %p388
      %p391 = scmp.ne.s32.totalorder %s374, %s390
      %p392 = scmp.eq.s32.totalorder %s44, 0
      %p393 = por %p391, %p392
      %s395 = sadd.s32 %s394, 1
      %p398 = scmp.eq.s32.totalorder %s38, 1
      %p399 = scmp.ne.s32.totalorder %s394, %s396
      %p400 = scmp.eq.s32.totalorder %s38, 0
      %p401 = por %p399, %p400
      %p402 = scmp.ne.s32.totalorder %s394, %s396
      %p403 = scmp.eq.s32.totalorder %s43, 1
      %p404 = por %p402, %p403
      %p405 = scmp.ne.s32.totalorder %s396, %s397
      %p406 = scmp.eq.s32.totalorder %s43, 0
      %p407 = por %p405, %p406
      %p408 = scmp.ne.s32.totalorder %s396, %s397
      %p409 = scmp.eq.s32.totalorder %s44, 1
      %p410 = por %p408, %p409
      %p412 = scmp.ne.s32.totalorder %s397, %s411
      %p413 = scmp.eq.s32.totalorder %s44, 0
      %p414 = por %p412, %p413
      %s416 = sadd.s32 %s415, 1
      %p419 = scmp.eq.s32.totalorder %s38, 1
      %p420 = scmp.ne.s32.totalorder %s415, %s417
      %p421 = scmp.eq.s32.totalorder %s38, 0
      %p422 = por %p420, %p421
      %p423 = scmp.ne.s32.totalorder %s415, %s417
      %p424 = scmp.eq.s32.totalorder %s43, 1
      %p425 = por %p423, %p424
      %p426 = scmp.ne.s32.totalorder %s417, %s418
      %p427 = scmp.eq.s32.totalorder %s43, 0
      %p428 = por %p426, %p427
      %p429 = scmp.ne.s32.totalorder %s417, %s418
      %p430 = scmp.eq.s32.totalorder %s44, 1
      %p431 = por %p429, %p430
      %p433 = scmp.ne.s32.totalorder %s418, %s432
      %p434 = scmp.eq.s32.totalorder %s44, 0
      %p435 = por %p433, %p434
      %s436 = ssub.s32 %s45, %s57
      %s437 = ssub.s32 %s46, %s53
      %s438 = sor.u32 %s436, %s437
      %p439 = scmp.eq.s32.totalorder %s438, 0
      %s441 = sadd.s32 %s440, 1
      %s442 = scalar_select %p439, %s440, %s441
      %p445 = pneg %p439
      %p446 = scmp.eq.s32.totalorder %s38, 1
      %p447 = por %p445, %p446
      %p448 = scmp.ne.s32.totalorder %s440, %s443
      %p449 = scmp.eq.s32.totalorder %s38, 0
      %p450 = por %p448, %p449
      %p451 = scmp.ne.s32.totalorder %s440, %s443
      %p452 = scmp.eq.s32.totalorder %s43, 1
      %p453 = por %p451, %p452
      %p454 = scmp.ne.s32.totalorder %s443, %s444
      %p455 = scmp.eq.s32.totalorder %s43, 0
      %p456 = por %p454, %p455
      %p457 = scmp.ne.s32.totalorder %s443, %s444
      %p458 = scmp.eq.s32.totalorder %s44, 1
      %p459 = por %p457, %p458
      %p461 = scmp.ne.s32.totalorder %s444, %s460
      %p462 = scmp.eq.s32.totalorder %s44, 0
      %p463 = por %p461, %p462
      %s464 = ssub.s32 %s45, %s57
      %s465 = ssub.s32 %s46, %s53
      %s466 = sor.u32 %s464, %s465
      %p467 = scmp.eq.s32.totalorder %s466, 0
      %s469 = sadd.s32 %s468, 1
      %s470 = scalar_select %p467, %s468, %s469
      %p473 = pneg %p467
      %p474 = scmp.eq.s32.totalorder %s38, 1
      %p475 = por %p473, %p474
      %p476 = scmp.ne.s32.totalorder %s468, %s471
      %p477 = scmp.eq.s32.totalorder %s38, 0
      %p478 = por %p476, %p477
      %p479 = scmp.ne.s32.totalorder %s468, %s471
      %p480 = scmp.eq.s32.totalorder %s43, 1
      %p481 = por %p479, %p480
      %p482 = scmp.ne.s32.totalorder %s471, %s472
      %p483 = scmp.eq.s32.totalorder %s43, 0
      %p484 = por %p482, %p483
      %p485 = scmp.ne.s32.totalorder %s471, %s472
      %p486 = scmp.eq.s32.totalorder %s44, 1
      %p487 = por %p485, %p486
      %p489 = scmp.ne.s32.totalorder %s472, %s488
      %p490 = scmp.eq.s32.totalorder %s44, 0
      %p491 = por %p489, %p490
      %s492 = ssub.s32 %s45, %s57
      %s493 = ssub.s32 %s46, %s53
      %s494 = sor.u32 %s492, %s493
      %p495 = scmp.eq.s32.totalorder %s494, 0
      %s497 = sadd.s32 %s496, 1
      %s498 = scalar_select %p495, %s496, %s497
      %p501 = pneg %p495
      %p502 = scmp.eq.s32.totalorder %s38, 1
      %p503 = por %p501, %p502
      %p504 = scmp.ne.s32.totalorder %s496, %s499
      %p505 = scmp.eq.s32.totalorder %s38, 0
      %p506 = por %p504, %p505
      %p507 = scmp.ne.s32.totalorder %s496, %s499
      %p508 = scmp.eq.s32.totalorder %s43, 1
      %p509 = por %p507, %p508
      %p510 = scmp.ne.s32.totalorder %s499, %s500
      %p511 = scmp.eq.s32.totalorder %s43, 0
      %p512 = por %p510, %p511
      %p513 = scmp.ne.s32.totalorder %s499, %s500
      %p514 = scmp.eq.s32.totalorder %s44, 1
      %p515 = por %p513, %p514
      %p517 = scmp.ne.s32.totalorder %s500, %s516
      %p518 = scmp.eq.s32.totalorder %s44, 0
      %p519 = por %p517, %p518
      %p520 = scmp.le.s32.totalorder 1, %s38
      %p521 = scmp.lt.s32.totalorder %s38, 3
      %p522 = pnand %p520, %p521
      %p523 = pneg %p522
      // Predicated region
      $region9: #{tpu_custom_call.1} parent=5 // pred_check
        _
      $region10: #{tpu_custom_call.1} parent=5 // pred_check_branch
        %525 = sbr.rel (%p522) target = $region12
      $region11: #{tpu_custom_call.1} parent=5 // pred_region
        %s526 = ssub.s32 %s38, 1
        // Predicated region
        $region13: #{tpu_custom_call.1} parent=11 // pred_check
          %p527 = pneg %p407
        $region14: #{tpu_custom_call.1} parent=11 // pred_check_branch
          %529 = sbr.rel (%p527) target = $region16
        $region15: #{tpu_custom_call.1} parent=11 // pred_region
          _
        $region16: #{tpu_custom_call.1} parent=11 // pred_fallthru
          _
        // Predicated region
        $region17: #{tpu_custom_call.1} parent=11 // pred_check
          %p530 = pneg %p428
        $region18: #{tpu_custom_call.1} parent=11 // pred_check_branch
          %532 = sbr.rel (%p530) target = $region20
        $region19: #{tpu_custom_call.1} parent=11 // pred_region
          _
        $region20: #{tpu_custom_call.1} parent=11 // pred_fallthru
          _
      $region12: #{tpu_custom_call.1} parent=5 // pred_fallthru
        _
      %p533 = scmp.lt.s32.totalorder %s38, 2
      // Predicated region
      $region21: #{tpu_custom_call.1} parent=5 // pred_check
        %p534 = pneg %p533
      $region22: #{tpu_custom_call.1} parent=5 // pred_check_branch
        %536 = sbr.rel (%p534) target = $region24
      $region23: #{tpu_custom_call.1} parent=5 // pred_region
        // Predicated region
        $region25: #{tpu_custom_call.1} parent=23 // pred_check
          %p537 = pneg %p72
        $region26: #{tpu_custom_call.1} parent=23 // pred_check_branch
          %539 = sbr.rel (%p537) target = $region28
        $region27: #{tpu_custom_call.1} parent=23 // pred_region
          %s540 = smul.u32 2, %s46
          %p541 = scmp.lt.s32.totalorder %s45, 1
          %s542 = scalar_select %p541, %s45, 1
          %p543 = scmp.lt.s32.totalorder %s540, 1
          %s544 = scalar_select %p543, %s540, 1
          %s545 = smul.addr %s542, 4
          %s546 = sadd.s32 %s544, %s545
          %s547 = smul.addr %s546, 8
          %s548 = scalar_lea.vmem %s0, %s547
          %s549 = smul.u32 2, %s46
        $region28: #{tpu_custom_call.1} parent=23 // pred_fallthru
          _
        // Predicated region
        $region29: #{tpu_custom_call.1} parent=23 // pred_check
          %p550 = pneg %p100
        $region30: #{tpu_custom_call.1} parent=23 // pred_check_branch
          %552 = sbr.rel (%p550) target = $region32
        $region31: #{tpu_custom_call.1} parent=23 // pred_region
          %s553 = smul.u32 2, %s46
          %p554 = scmp.lt.s32.totalorder %s45, 1
          %s555 = scalar_select %p554, %s45, 1
          %p556 = scmp.lt.s32.totalorder %s553, 1
          %s557 = scalar_select %p556, %s553, 1
          %s558 = smul.addr %s555, 4
          %s559 = sadd.s32 %s557, %s558
          %s560 = smul.addr %s559, 8
          %s561 = scalar_lea.vmem %s1, %s560
          %s562 = smul.u32 2, %s46
        $region32: #{tpu_custom_call.1} parent=23 // pred_fallthru
          _
        // Predicated region
        $region33: #{tpu_custom_call.1} parent=23 // pred_check
          %p563 = pneg %p128
        $region34: #{tpu_custom_call.1} parent=23 // pred_check_branch
          %565 = sbr.rel (%p563) target = $region36
        $region35: #{tpu_custom_call.1} parent=23 // pred_region
          %s566 = smul.u32 2, %s46
          %p567 = scmp.lt.s32.totalorder %s45, 1
          %s568 = scalar_select %p567, %s45, 1
          %p569 = scmp.lt.s32.totalorder %s566, 1
          %s570 = scalar_select %p569, %s566, 1
          %s571 = smul.addr %s568, 4
          %s572 = sadd.s32 %s570, %s571
          %s573 = smul.addr %s572, 8
          %s574 = scalar_lea.vmem %s2, %s573
          %s575 = smul.u32 2, %s46
        $region36: #{tpu_custom_call.1} parent=23 // pred_fallthru
          _
        // Predicated region
        $region37: #{tpu_custom_call.1} parent=23 // pred_check
          %p576 = pneg %p156
        $region38: #{tpu_custom_call.1} parent=23 // pred_check_branch
          %578 = sbr.rel (%p576) target = $region40
        $region39: #{tpu_custom_call.1} parent=23 // pred_region
          %s579 = smul.u32 2, %s46
          %p580 = scmp.lt.s32.totalorder %s45, 1
          %s581 = scalar_select %p580, %s45, 1
          %p582 = scmp.lt.s32.totalorder %s579, 1
          %s583 = scalar_select %p582, %s579, 1
          %s584 = smul.addr %s581, 4
          %s585 = sadd.s32 %s583, %s584
          %s586 = smul.addr %s585, 8
          %s587 = scalar_lea.vmem %s3, %s586
          %s588 = smul.u32 2, %s46
        $region40: #{tpu_custom_call.1} parent=23 // pred_fallthru
          _
        // Predicated region
        $region41: #{tpu_custom_call.1} parent=23 // pred_check
          %p589 = pneg %p184
        $region42: #{tpu_custom_call.1} parent=23 // pred_check_branch
          %591 = sbr.rel (%p589) target = $region44
        $region43: #{tpu_custom_call.1} parent=23 // pred_region
          %s592 = smul.u32 2, %s46
          %p593 = scmp.lt.s32.totalorder %s45, 1
          %s594 = scalar_select %p593, %s45, 1
          %p595 = scmp.lt.s32.totalorder %s592, 1
          %s596 = scalar_select %p595, %s592, 1
          %s597 = smul.addr %s594, 4
          %s598 = sadd.s32 %s596, %s597
          %s599 = smul.addr %s598, 8
          %s600 = scalar_lea.vmem %s4, %s599
          %s601 = smul.u32 2, %s46
        $region44: #{tpu_custom_call.1} parent=23 // pred_fallthru
          _
        // Predicated region
        $region45: #{tpu_custom_call.1} parent=23 // pred_check
          %p602 = pneg %p212
        $region46: #{tpu_custom_call.1} parent=23 // pred_check_branch
          %604 = sbr.rel (%p602) target = $region48
        $region47: #{tpu_custom_call.1} parent=23 // pred_region
          %s605 = sand.u32 %s202, 1
          %s606 = scalar_lea.sflag [#allocation3], %s605
          %s607 = sand.u32 %s202, 1
          %s608 = smul.addr %s607, 32
          %s609 = scalar_lea.vmem [#allocation2], %s608
          %s610 = smul.u32 2, %s46
          %s612 = ssub.s32 512, 512
          %613 = vsyncadd %s606, %s612
          %s614 = smul.addr %s45, 4
          %s615 = sadd.s32 %s610, %s614
          %s616 = smul.addr %s615, 128
          %s617 = scalar_lea.hbm %s5, %s616
          %s618 = sshll.u32 %s609, 4
          %s619 = int_to_ptr.vmem [resolvable:$true] %s618
          %624 = dma.hbm_to_vmem [thread:$0]  %s617, 512, %s619, %s606, 256, 256, 16
        $region48: #{tpu_custom_call.1} parent=23 // pred_fallthru
          _
        // Predicated region
        $region49: #{tpu_custom_call.1} parent=23 // pred_check
          %p625 = pneg %p240
        $region50: #{tpu_custom_call.1} parent=23 // pred_check_branch
          %627 = sbr.rel (%p625) target = $region52
        $region51: #{tpu_custom_call.1} parent=23 // pred_region
          %s628 = sand.u32 %s38, 1
          %s629 = scalar_lea.sflag [#allocation6], %s628
          %s630 = sand.u32 %s230, 1
          %s631 = smul.addr %s630, 32
          %s632 = scalar_lea.vmem [#allocation5], %s631
          %s633 = smul.u32 2, %s46
          %s635 = ssub.s32 512, 512
          %636 = vsyncadd %s629, %s635
          %s637 = smul.addr %s45, 4
          %s638 = sadd.s32 %s633, %s637
          %s639 = smul.addr %s638, 128
          %s640 = scalar_lea.hbm %s6, %s639
          %s641 = sshll.u32 %s632, 4
          %s642 = int_to_ptr.vmem [resolvable:$true] %s641
          %647 = dma.hbm_to_vmem [thread:$0]  %s640, 512, %s642, %s629, 256, 256, 16
        $region52: #{tpu_custom_call.1} parent=23 // pred_fallthru
          _
        // Predicated region
        $region53: #{tpu_custom_call.1} parent=23 // pred_check
          %p648 = pneg %p268
        $region54: #{tpu_custom_call.1} parent=23 // pred_check_branch
          %650 = sbr.rel (%p648) target = $region56
        $region55: #{tpu_custom_call.1} parent=23 // pred_region
          %s651 = sand.u32 %s38, 1
          %s652 = scalar_lea.sflag [#allocation6], %s651
          %s653 = sand.u32 %s258, 1
          %s654 = smul.addr %s653, 32
          %s655 = scalar_lea.vmem [#allocation7], %s654
          %s656 = smul.u32 2, %s46
          %s658 = ssub.s32 512, 512
          %659 = vsyncadd %s652, %s658
          %s660 = smul.addr %s45, 4
          %s661 = sadd.s32 %s656, %s660
          %s662 = smul.addr %s661, 128
          %s663 = scalar_lea.hbm %s7, %s662
          %s664 = sshll.u32 %s655, 4
          %s665 = int_to_ptr.vmem [resolvable:$true] %s664
          %670 = dma.hbm_to_vmem [thread:$0]  %s663, 512, %s665, %s652, 256, 256, 16
        $region56: #{tpu_custom_call.1} parent=23 // pred_fallthru
          _
        // Predicated region
        $region57: #{tpu_custom_call.1} parent=23 // pred_check
          %p671 = pneg %p296
        $region58: #{tpu_custom_call.1} parent=23 // pred_check_branch
          %673 = sbr.rel (%p671) target = $region60
        $region59: #{tpu_custom_call.1} parent=23 // pred_region
          %s674 = sand.u32 %s38, 1
          %s675 = scalar_lea.sflag [#allocation9], %s674
          %s676 = sand.u32 %s286, 1
          %s677 = smul.addr %s676, 32
          %s678 = scalar_lea.vmem [#allocation8], %s677
          %s679 = smul.u32 2, %s46
          %s681 = ssub.s32 512, 512
          %682 = vsyncadd %s675, %s681
          %s683 = smul.addr %s45, 4
          %s684 = sadd.s32 %s679, %s683
          %s685 = smul.addr %s684, 128
          %s686 = scalar_lea.hbm %s8, %s685
          %s687 = sshll.u32 %s678, 4
          %s688 = int_to_ptr.vmem [resolvable:$true] %s687
          %693 = dma.hbm_to_vmem [thread:$0]  %s686, 512, %s688, %s675, 256, 256, 16
        $region60: #{tpu_custom_call.1} parent=23 // pred_fallthru
          _
        // Predicated region
        $region61: #{tpu_custom_call.1} parent=23 // pred_check
          %p694 = pneg %p324
        $region62: #{tpu_custom_call.1} parent=23 // pred_check_branch
          %696 = sbr.rel (%p694) target = $region64
        $region63: #{tpu_custom_call.1} parent=23 // pred_region
          %s697 = sand.u32 %s38, 1
          %s698 = scalar_lea.sflag [#allocation9], %s697
          %s699 = sand.u32 %s314, 1
          %s700 = smul.addr %s699, 32
          %s701 = scalar_lea.vmem [#allocation10], %s700
          %s702 = smul.u32 2, %s46
          %s704 = ssub.s32 512, 512
          %705 = vsyncadd %s698, %s704
          %s706 = smul.addr %s45, 4
          %s707 = sadd.s32 %s702, %s706
          %s708 = smul.addr %s707, 128
          %s709 = scalar_lea.hbm %s9, %s708
          %s710 = sshll.u32 %s701, 4
          %s711 = int_to_ptr.vmem [resolvable:$true] %s710
          %716 = dma.hbm_to_vmem [thread:$0]  %s709, 512, %s711, %s698, 256, 256, 16
        $region64: #{tpu_custom_call.1} parent=23 // pred_fallthru
          _
        // Predicated region
        $region65: #{tpu_custom_call.1} parent=23 // pred_check
          %p717 = pneg %p352
        $region66: #{tpu_custom_call.1} parent=23 // pred_check_branch
          %719 = sbr.rel (%p717) target = $region68
        $region67: #{tpu_custom_call.1} parent=23 // pred_region
          %s720 = smul.u32 2, %s46
          %p721 = scmp.lt.s32.totalorder %s45, 1
          %s722 = scalar_select %p721, %s45, 1
          %p723 = scmp.lt.s32.totalorder %s720, 1
          %s724 = scalar_select %p723, %s720, 1
          %s725 = smul.addr %s722, 2
          %s726 = sadd.s32 %s724, %s725
          %s727 = scalar_lea.vmem %s10, %s726
          %s728 = smul.u32 2, %s46
        $region68: #{tpu_custom_call.1} parent=23 // pred_fallthru
          _
        // Predicated region
        $region69: #{tpu_custom_call.1} parent=23 // pred_check
          %p729 = pneg %p380
        $region70: #{tpu_custom_call.1} parent=23 // pred_check_branch
          %731 = sbr.rel (%p729) target = $region72
        $region71: #{tpu_custom_call.1} parent=23 // pred_region
          %s732 = smul.u32 2, %s46
          %p733 = scmp.lt.s32.totalorder %s45, 1
          %s734 = scalar_select %p733, %s45, 1
          %p735 = scmp.lt.s32.totalorder %s732, 1
          %s736 = scalar_select %p735, %s732, 1
          %s737 = smul.addr %s734, 2
          %s738 = sadd.s32 %s736, %s737
          %s739 = scalar_lea.vmem %s11, %s738
          %s740 = smul.u32 2, %s46
        $region72: #{tpu_custom_call.1} parent=23 // pred_fallthru
          _
      $region24: #{tpu_custom_call.1} parent=5 // pred_fallthru
        _
      %p741 = scmp.le.s32.totalorder 1, %s38
      %p742 = scmp.lt.s32.totalorder %s38, 3
      %p743 = pnand %p741, %p742
      %p744 = pneg %p743
      // Predicated region
      $region73: #{tpu_custom_call.1} parent=5 // pred_check
        _
      $region74: #{tpu_custom_call.1} parent=5 // pred_check_branch
        %746 = sbr.rel (%p743) target = $region76
      $region75: #{tpu_custom_call.1} parent=5 // pred_region
        %s747 = ssub.s32 %s38, 1
        %s748 = sand.u32 %s205, 1
        %s749 = scalar_lea.sflag [#allocation3], %s748
        %s750 = sand.u32 %s205, 1
        %s751 = smul.addr %s750, 32
        %s752 = scalar_lea.vmem [#allocation2], %s751
        // Predicated region
        $region77: #{tpu_custom_call.1} parent=75 // pred_check
          %p753 = pneg %p218
        $region78: #{tpu_custom_call.1} parent=75 // pred_check_branch
          %755 = sbr.rel (%p753) target = $region80
        $region79: #{tpu_custom_call.1} parent=75 // pred_region
          %756 = dma.done %s749, 512
        $region80: #{tpu_custom_call.1} parent=75 // pred_fallthru
          _
        %s757 = sand.u32 %s43, 1
        %s758 = scalar_lea.sflag [#allocation6], %s757
        %s759 = sand.u32 %s233, 1
        %s760 = smul.addr %s759, 32
        %s761 = scalar_lea.vmem [#allocation5], %s760
        // Predicated region
        $region81: #{tpu_custom_call.1} parent=75 // pred_check
          %p762 = pneg %p246
        $region82: #{tpu_custom_call.1} parent=75 // pred_check_branch
          %764 = sbr.rel (%p762) target = $region84
        $region83: #{tpu_custom_call.1} parent=75 // pred_region
          %765 = dma.done %s758, 512
        $region84: #{tpu_custom_call.1} parent=75 // pred_fallthru
          _
        %s766 = sand.u32 %s43, 1
        %s767 = scalar_lea.sflag [#allocation6], %s766
        %s768 = sand.u32 %s261, 1
        %s769 = smul.addr %s768, 32
        %s770 = scalar_lea.vmem [#allocation7], %s769
        // Predicated region
        $region85: #{tpu_custom_call.1} parent=75 // pred_check
          %p771 = pneg %p274
        $region86: #{tpu_custom_call.1} parent=75 // pred_check_branch
          %773 = sbr.rel (%p771) target = $region88
        $region87: #{tpu_custom_call.1} parent=75 // pred_region
          %774 = dma.done %s767, 512
        $region88: #{tpu_custom_call.1} parent=75 // pred_fallthru
          _
        %s775 = sand.u32 %s43, 1
        %s776 = scalar_lea.sflag [#allocation9], %s775
        %s777 = sand.u32 %s289, 1
        %s778 = smul.addr %s777, 32
        %s779 = scalar_lea.vmem [#allocation8], %s778
        // Predicated region
        $region89: #{tpu_custom_call.1} parent=75 // pred_check
          %p780 = pneg %p302
        $region90: #{tpu_custom_call.1} parent=75 // pred_check_branch
          %782 = sbr.rel (%p780) target = $region92
        $region91: #{tpu_custom_call.1} parent=75 // pred_region
          %783 = dma.done %s776, 512
        $region92: #{tpu_custom_call.1} parent=75 // pred_fallthru
          _
        %s784 = sand.u32 %s43, 1
        %s785 = scalar_lea.sflag [#allocation9], %s784
        %s786 = sand.u32 %s317, 1
        %s787 = smul.addr %s786, 32
        %s788 = scalar_lea.vmem [#allocation10], %s787
        // Predicated region
        $region93: #{tpu_custom_call.1} parent=75 // pred_check
          %p789 = pneg %p330
        $region94: #{tpu_custom_call.1} parent=75 // pred_check_branch
          %791 = sbr.rel (%p789) target = $region96
        $region95: #{tpu_custom_call.1} parent=75 // pred_region
          %792 = dma.done %s785, 512
        $region96: #{tpu_custom_call.1} parent=75 // pred_fallthru
          _
        %s793 = smul.u32 2, %s48
        %p794 = scmp.lt.s32.totalorder %s47, 1
        %s795 = scalar_select %p794, %s47, 1
        %p796 = scmp.lt.s32.totalorder %s793, 1
        %s797 = scalar_select %p796, %s793, 1
        %s798 = smul.addr %s795, 4
        %s799 = sadd.s32 %s797, %s798
        %s800 = smul.addr %s799, 8
        %s801 = scalar_lea.vmem %s0, %s800
        %p802 = pneg %p78
        %p803 = pneg %p75
        %s804 = smul.u32 2, %s48
        %p805 = scmp.lt.s32.totalorder %s47, 1
        %s806 = scalar_select %p805, %s47, 1
        %p807 = scmp.lt.s32.totalorder %s804, 1
        %s808 = scalar_select %p807, %s804, 1
        %s809 = smul.addr %s806, 4
        %s810 = sadd.s32 %s808, %s809
        %s811 = smul.addr %s810, 8
        %s812 = scalar_lea.vmem %s1, %s811
        %p813 = pneg %p106
        %p814 = pneg %p103
        %s815 = smul.u32 2, %s48
        %p816 = scmp.lt.s32.totalorder %s47, 1
        %s817 = scalar_select %p816, %s47, 1
        %p818 = scmp.lt.s32.totalorder %s815, 1
        %s819 = scalar_select %p818, %s815, 1
        %s820 = smul.addr %s817, 4
        %s821 = sadd.s32 %s819, %s820
        %s822 = smul.addr %s821, 8
        %s823 = scalar_lea.vmem %s2, %s822
        %p824 = pneg %p134
        %p825 = pneg %p131
        %s826 = smul.u32 2, %s48
        %p827 = scmp.lt.s32.totalorder %s47, 1
        %s828 = scalar_select %p827, %s47, 1
        %p829 = scmp.lt.s32.totalorder %s826, 1
        %s830 = scalar_select %p829, %s826, 1
        %s831 = smul.addr %s828, 4
        %s832 = sadd.s32 %s830, %s831
        %s833 = smul.addr %s832, 8
        %s834 = scalar_lea.vmem %s3, %s833
        %p835 = pneg %p162
        %p836 = pneg %p159
        %s837 = smul.u32 2, %s48
        %p838 = scmp.lt.s32.totalorder %s47, 1
        %s839 = scalar_select %p838, %s47, 1
        %p840 = scmp.lt.s32.totalorder %s837, 1
        %s841 = scalar_select %p840, %s837, 1
        %s842 = smul.addr %s839, 4
        %s843 = sadd.s32 %s841, %s842
        %s844 = smul.addr %s843, 8
        %s845 = scalar_lea.vmem %s4, %s844
        %p846 = pneg %p190
        %p847 = pneg %p187
        %s848 = sand.u32 %s205, 1
        %s849 = scalar_lea.sflag [#allocation3], %s848
        %s850 = sand.u32 %s205, 1
        %s851 = smul.addr %s850, 32
        %s852 = scalar_lea.vmem [#allocation2], %s851
        %p853 = pneg %p218
        %p854 = pneg %p215
        %s855 = sand.u32 %s43, 1
        %s856 = scalar_lea.sflag [#allocation6], %s855
        %s857 = sand.u32 %s233, 1
        %s858 = smul.addr %s857, 32
        %s859 = scalar_lea.vmem [#allocation5], %s858
        %p860 = pneg %p246
        %p861 = pneg %p243
        %s862 = sand.u32 %s43, 1
        %s863 = scalar_lea.sflag [#allocation6], %s862
        %s864 = sand.u32 %s261, 1
        %s865 = smul.addr %s864, 32
        %s866 = scalar_lea.vmem [#allocation7], %s865
        %p867 = pneg %p274
        %p868 = pneg %p271
        %s869 = sand.u32 %s43, 1
        %s870 = scalar_lea.sflag [#allocation9], %s869
        %s871 = sand.u32 %s289, 1
        %s872 = smul.addr %s871, 32
        %s873 = scalar_lea.vmem [#allocation8], %s872
        %p874 = pneg %p302
        %p875 = pneg %p299
        %s876 = sand.u32 %s43, 1
        %s877 = scalar_lea.sflag [#allocation9], %s876
        %s878 = sand.u32 %s317, 1
        %s879 = smul.addr %s878, 32
        %s880 = scalar_lea.vmem [#allocation10], %s879
        %p881 = pneg %p330
        %p882 = pneg %p327
        %s883 = smul.u32 2, %s48
        %p884 = scmp.lt.s32.totalorder %s47, 1
        %s885 = scalar_select %p884, %s47, 1
        %p886 = scmp.lt.s32.totalorder %s883, 1
        %s887 = scalar_select %p886, %s883, 1
        %s888 = smul.addr %s885, 2
        %s889 = sadd.s32 %s887, %s888
        %s890 = scalar_lea.vmem %s10, %s889
        %p891 = pneg %p358
        %p892 = pneg %p355
        %s893 = smul.u32 2, %s48
        %p894 = scmp.lt.s32.totalorder %s47, 1
        %s895 = scalar_select %p894, %s47, 1
        %p896 = scmp.lt.s32.totalorder %s893, 1
        %s897 = scalar_select %p896, %s893, 1
        %s898 = smul.addr %s895, 2
        %s899 = sadd.s32 %s897, %s898
        %s900 = scalar_lea.vmem %s11, %s899
        %p901 = pneg %p386
        %p902 = pneg %p383
        %p903 = pneg %p407
        %p904 = pneg %p404
        %p905 = pneg %p428
        %p906 = pneg %p425
        %p907 = pneg %p456
        %p908 = pneg %p453
        %s909 = sand.u32 %s443, 1
        %s910 = scalar_lea.sflag [#allocation4], %s909
        %s911 = sand.u32 %s443, 1
        %s912 = smul.addr %s911, 32
        %s913 = scalar_lea.vmem [#allocation11], %s912
        %p914 = pneg %p484
        %p915 = pneg %p481
        %s916 = sand.u32 %s471, 1
        %s917 = scalar_lea.sflag [#allocation13], %s916
        %s918 = sand.u32 %s471, 1
        %s919 = smul.addr %s918, 32
        %s920 = scalar_lea.vmem [#allocation12], %s919
        %p921 = pneg %p512
        %p922 = pneg %p509
        %s923 = smul.u32 2, %s48
        %p924 = scmp.lt.s32.totalorder %s47, 1
        %s925 = scalar_select %p924, %s47, 1
        %p926 = scmp.lt.s32.totalorder %s923, 1
        %s927 = scalar_select %p926, %s923, 1
        %s928 = smul.addr %s925, 2
        %s929 = sadd.s32 %s927, %s928
        %s930 = smul.addr %s929, 4
        %s931 = scalar_lea.vmem %s16, %s930
        %s932 = smul.u32 2, %s48
        %p933 = scmp.lt.s32.totalorder %s47, 1
        %s934 = scalar_select %p933, %s47, 1
        %p935 = scmp.lt.s32.totalorder %s932, 1
        %s936 = scalar_select %p935, %s932, 1
        %s937 = smul.addr %s934, 4
        %s938 = sadd.s32 %s936, %s937
        %s939 = smul.addr %s938, 8
        %s940 = scalar_lea.vmem %s0, %s939
        %s941 = smul.u32 2, %s48
        %s942 = smul.u32 2, %s48
        %p943 = scmp.lt.s32.totalorder %s47, 1
        %s944 = scalar_select %p943, %s47, 1
        %p945 = scmp.lt.s32.totalorder %s942, 1
        %s946 = scalar_select %p945, %s942, 1
        %s947 = smul.addr %s944, 4
        %s948 = sadd.s32 %s946, %s947
        %s949 = smul.addr %s948, 8
        %s950 = scalar_lea.vmem %s1, %s949
        %s951 = smul.u32 2, %s48
        %s952 = smul.u32 2, %s48
        %p953 = scmp.lt.s32.totalorder %s47, 1
        %s954 = scalar_select %p953, %s47, 1
        %p955 = scmp.lt.s32.totalorder %s952, 1
        %s956 = scalar_select %p955, %s952, 1
        %s957 = smul.addr %s954, 4
        %s958 = sadd.s32 %s956, %s957
        %s959 = smul.addr %s958, 8
        %s960 = scalar_lea.vmem %s2, %s959
        %s961 = smul.u32 2, %s48
        %s962 = smul.u32 2, %s48
        %p963 = scmp.lt.s32.totalorder %s47, 1
        %s964 = scalar_select %p963, %s47, 1
        %p965 = scmp.lt.s32.totalorder %s962, 1
        %s966 = scalar_select %p965, %s962, 1
        %s967 = smul.addr %s964, 4
        %s968 = sadd.s32 %s966, %s967
        %s969 = smul.addr %s968, 8
        %s970 = scalar_lea.vmem %s3, %s969
        %s971 = smul.u32 2, %s48
        %s972 = smul.u32 2, %s48
        %p973 = scmp.lt.s32.totalorder %s47, 1
        %s974 = scalar_select %p973, %s47, 1
        %p975 = scmp.lt.s32.totalorder %s972, 1
        %s976 = scalar_select %p975, %s972, 1
        %s977 = smul.addr %s974, 4
        %s978 = sadd.s32 %s976, %s977
        %s979 = smul.addr %s978, 8
        %s980 = scalar_lea.vmem %s4, %s979
        %s981 = smul.u32 2, %s48
        %s982 = smul.u32 2, %s48
        %s983 = smul.u32 2, %s48
        %s984 = smul.u32 2, %s48
        %s985 = smul.u32 2, %s48
        %s986 = smul.u32 2, %s48
        %s987 = smul.u32 2, %s48
        %p988 = scmp.lt.s32.totalorder %s47, 1
        %s989 = scalar_select %p988, %s47, 1
        %p990 = scmp.lt.s32.totalorder %s987, 1
        %s991 = scalar_select %p990, %s987, 1
        %s992 = smul.addr %s989, 2
        %s993 = sadd.s32 %s991, %s992
        %s994 = scalar_lea.vmem %s10, %s993
        %s995 = smul.u32 2, %s48
        %s996 = smul.u32 2, %s48
        %p997 = scmp.lt.s32.totalorder %s47, 1
        %s998 = scalar_select %p997, %s47, 1
        %p999 = scmp.lt.s32.totalorder %s996, 1
        %s1000 = scalar_select %p999, %s996, 1
        %s1001 = smul.addr %s998, 2
        %s1002 = sadd.s32 %s1000, %s1001
        %s1003 = scalar_lea.vmem %s11, %s1002
        %s1004 = smul.u32 2, %s48
        %s1005 = smul.u32 2, %s48
        %s1006 = smul.u32 2, %s48
        %s1007 = smul.u32 2, %s48
        %p1008 = scmp.lt.s32.totalorder %s47, 1
        %s1009 = scalar_select %p1008, %s47, 1
        %p1010 = scmp.lt.s32.totalorder %s1007, 1
        %s1011 = scalar_select %p1010, %s1007, 1
        %s1012 = smul.addr %s1009, 2
        %s1013 = sadd.s32 %s1011, %s1012
        %s1014 = smul.addr %s1013, 4
        %s1015 = scalar_lea.vmem %s16, %s1014
        %s1016 = smul.u32 2, %s48
        %v1018 = vld [vmem:[%s940] sm:$0xff]
        %v1019 = vld [vmem:[%s940 + $0x8] sm:$0xff]
        %v1020 = vld [vmem:[%s940 + $0x10] sm:$0xff]
        %v1021 = vld [vmem:[%s940 + $0x18] sm:$0xff]
        %v1022 = vld [vmem:[%s950] sm:$0xff]
        %v1023 = vld [vmem:[%s950 + $0x8] sm:$0xff]
        %v1024 = vld [vmem:[%s950 + $0x10] sm:$0xff]
        %v1025 = vld [vmem:[%s950 + $0x18] sm:$0xff]
        %v1026 = vld [vmem:[%s960] sm:$0xff]
        %v1027 = vld [vmem:[%s960 + $0x8] sm:$0xff]
        %v1028 = vld [vmem:[%s960 + $0x10] sm:$0xff]
        %v1029 = vld [vmem:[%s960 + $0x18] sm:$0xff]
        %v1030 = vld [vmem:[%s970] sm:$0xff]
        %v1031 = vld [vmem:[%s970 + $0x8] sm:$0xff]
        %v1032 = vld [vmem:[%s970 + $0x10] sm:$0xff]
        %v1033 = vld [vmem:[%s970 + $0x18] sm:$0xff]
        %v1034 = vld [vmem:[%s980] sm:$0xff]
        %v1035 = vld [vmem:[%s980 + $0x8] sm:$0xff]
        %v1036 = vld [vmem:[%s980 + $0x10] sm:$0xff]
        %v1037 = vld [vmem:[%s980 + $0x18] sm:$0xff]
        %v1038 = vld [vmem:[%s752] sm:$0xff]
        %v1039 = vld [vmem:[%s752 + $0x8] sm:$0xff]
        %v1040 = vld [vmem:[%s752 + $0x10] sm:$0xff]
        %v1041 = vld [vmem:[%s752 + $0x18] sm:$0xff]
        %v1042 = vld [vmem:[%s761] sm:$0xff]
        %v1043 = vld [vmem:[%s761 + $0x8] sm:$0xff]
        %v1044 = vld [vmem:[%s761 + $0x10] sm:$0xff]
        %v1045 = vld [vmem:[%s761 + $0x18] sm:$0xff]
        %v1046 = vld [vmem:[%s770] sm:$0xff]
        %v1047 = vld [vmem:[%s770 + $0x8] sm:$0xff]
        %v1048 = vld [vmem:[%s770 + $0x10] sm:$0xff]
        %v1049 = vld [vmem:[%s770 + $0x18] sm:$0xff]
        %v1050 = vld [vmem:[%s779] sm:$0xff]
        %v1051 = vld [vmem:[%s779 + $0x8] sm:$0xff]
        %v1052 = vld [vmem:[%s779 + $0x10] sm:$0xff]
        %v1053 = vld [vmem:[%s779 + $0x18] sm:$0xff]
        %v1054 = vld [vmem:[%s788] sm:$0xff]
        %v1055 = vld [vmem:[%s788 + $0x8] sm:$0xff]
        %v1056 = vld [vmem:[%s788 + $0x10] sm:$0xff]
        %v1057 = vld [vmem:[%s788 + $0x18] sm:$0xff]
        %v1058 = vpack.c.bf16 %v1020, %v1018
        %v1059 = vpack.c.bf16 %v1021, %v1019
        %v1060 = vpack.c.bf16 %v1028, %v1026
        %v1061 = vpack.c.bf16 %v1029, %v1027
        %v1062 = vpack.c.bf16 %v1032, %v1030
        %v1063 = vpack.c.bf16 %v1033, %v1031
        %v1064 = vld [vmem:[%s12] sm:$0xf]
        %v1065 = vld [vmem:[%s12 + $0x4] sm:$0xf]
        %v1066 = vld [vmem:[%s13] sm:$0xff]
        %v1067 = vld [vmem:[%s13 + $0x8] sm:$0xff]
        %1069 = vset.pattern.permute.xlu0 0
        %1070 = vperm.xlu0 %1069, %v1066
        %v1071 = vpop.permute.xlu0 %1070
        %1074 = vset.pattern.permute.xlu0 0
        %1075 = vperm.xlu0 %1074, %v1067
        %v1076 = vpop.permute.xlu0 %1075
        %v1080 = vunpack.c.l.b16 %v1064
        %v1081 = vunpack.c.l.b16 %v1065
        %v1082 = vpack.c.b16 %v1081, %v1080
        %vm1083 = vcmask 392192
        %v1085 = vsel %vm1083, %v1082, 0
        %1087 = vmatprep.subr.bf16.mxu0 %v1059
        %1088 = vmatpush1.bf16.msra.mxu0 %v1058
        %1089 = vmatprep.subr.bf16.mxu0 %v1061
        %1090 = vmatpush1.bf16.msra.mxu0 %v1060
        %1091 = vmatprep.subr.bf16.mxu0 %v1063
        %1092 = vmatpush1.bf16.msra.mxu0 %v1062
        %1093 = vmatprep.subr.bf16.mxu0 0
        %1094 = vmatpush1.bf16.msra.mxu0 0
        %1095 = vmatprep.subr.bf16.mxu0 0
        %1096 = vmatpush1.bf16.msra.mxu0 0
        %1097 = vmatprep.subr.bf16.mxu0 0
        %1098 = vmatpush1.bf16.msra.mxu0 0
        %1099 = vmatprep.subr.bf16.mxu0 0
        %1100 = vmatpush1.bf16.msra.mxu0 0
        %1101 = vmatprep.subr.bf16.mxu0 0
        %1102 = vmatpush1.bf16.msra.mxu0 0
        %1103 = vmatprep.subr.bf16.mxu0 0
        %1104 = vmatpush1.bf16.msra.mxu0 0
        %1105 = vmatprep.subr.bf16.mxu0 0
        %1106 = vmatpush1.bf16.msra.mxu0 0
        %1107 = vmatprep.subr.bf16.mxu0 0
        %1108 = vmatpush1.bf16.msra.mxu0 0
        %1109 = vmatprep.subr.bf16.mxu0 0
        %1110 = vmatpush1.bf16.msra.mxu0 0
        %1111 = vmatprep.subr.bf16.mxu0 0
        %1112 = vmatpush1.bf16.msra.mxu0 0
        %1113 = vmatprep.subr.bf16.mxu0 0
        %1114 = vmatpush1.bf16.msra.mxu0 0
        %1115 = vmatprep.subr.bf16.mxu0 0
        %1116 = vmatpush1.bf16.msra.mxu0 0
        %1117 = vmatprep.subr.bf16.mxu0 0
        %1118 = vmatpush1.bf16.msra.mxu0 0
        %1119 = vmatprep.mubr.bf16.mxu0 0
        %1120 = vmatmul.mubr.bf16.gmra.mrb[0].mxu0 %v1085
        %v1121 = vpop.f32.mrb[0].mxu0
        %v1122 = vadd.f32 %v1071, %v1121
        %v1123 = vpop.f32.mrb[0].mxu0
        %v1124 = vadd.f32 %v1071, %v1123
        %v1125 = vpop.f32.mrb[0].mxu0
        %v1126 = vadd.f32 %v1076, %v1125
        %v1127 = vpop.f32.mrb[0].mxu0
        %v1128 = vadd.f32 %v1076, %v1127
        %1129 = vdwg.mxu0
        %v1130 = vmax.f32 %v1122, 0.0
        %v1131 = vmax.f32 %v1124, 0.0
        %v1132 = vmax.f32 %v1126, 0.0
        %v1133 = vmax.f32 %v1128, 0.0
        %v1134 = vpack.c.bf16 %v1132, %v1130
        %v1135 = vpack.c.bf16 %v1133, %v1131
        %v1136 = vld [vmem:[%s12 + $0x8] sm:$0x3]
        %v1137 = vld [vmem:[%s13 + $0x10] sm:$0x7]
        %1139 = vset.pattern.permute.xlu0 0
        %1140 = vperm.xlu0 %1139, %v1137
        %v1141 = vpop.permute.xlu0 %1140
        %vm1143 = vcmask 130048
        %v1145 = vsel %vm1143, %v1136, 0
        %1147 = vmatprep.subr.bf16.mxu0 %v1135
        %1148 = vmatpush1.bf16.msra.mxu0 %v1134
        %1149 = vmatprep.subr.bf16.mxu0 0
        %1150 = vmatpush1.bf16.msra.mxu0 0
        %1151 = vmatprep.subr.bf16.mxu0 0
        %1152 = vmatpush1.bf16.msra.mxu0 0
        %1153 = vmatprep.subr.bf16.mxu0 0
        %1154 = vmatpush1.bf16.msra.mxu0 0
        %1155 = vmatprep.subr.bf16.mxu0 0
        %1156 = vmatpush1.bf16.msra.mxu0 0
        %1157 = vmatprep.subr.bf16.mxu0 0
        %1158 = vmatpush1.bf16.msra.mxu0 0
        %1159 = vmatprep.subr.bf16.mxu0 0
        %1160 = vmatpush1.bf16.msra.mxu0 0
        %1161 = vmatprep.subr.bf16.mxu0 0
        %1162 = vmatpush1.bf16.msra.mxu0 0
        %1163 = vmatprep.subr.bf16.mxu0 0
        %1164 = vmatpush1.bf16.msra.mxu0 0
        %1165 = vmatprep.subr.bf16.mxu0 0
        %1166 = vmatpush1.bf16.msra.mxu0 0
        %1167 = vmatprep.subr.bf16.mxu0 0
        %1168 = vmatpush1.bf16.msra.mxu0 0
        %1169 = vmatprep.subr.bf16.mxu0 0
        %1170 = vmatpush1.bf16.msra.mxu0 0
        %1171 = vmatprep.subr.bf16.mxu0 0
        %1172 = vmatpush1.bf16.msra.mxu0 0
        %1173 = vmatprep.subr.bf16.mxu0 0
        %1174 = vmatpush1.bf16.msra.mxu0 0
        %1175 = vmatprep.subr.bf16.mxu0 0
        %1176 = vmatpush1.bf16.msra.mxu0 0
        %1177 = vmatprep.subr.bf16.mxu0 0
        %1178 = vmatpush1.bf16.msra.mxu0 0
        %1179 = vmatprep.mubr.bf16.mxu0 0
        %1180 = vmatmul.mubr.bf16.gmra.mrb[0].mxu0 %v1145
        %v1181 = vpop.f32.mrb[0].mxu0
        %v1182 = vadd.f32 %v1141, %v1181
        %v1183 = vpop.f32.mrb[0].mxu0
        %v1184 = vadd.f32 %v1141, %v1183
        %v1185 = vpop.f32.mrb[0].mxu0
        %v1186 = vpop.f32.mrb[0].mxu0
        %1187 = vdwg.mxu0
        %vm1188 = vcmask 1042432
        %v1189 = vsel %vm1188, %v1182, -inf
        %v1190 = vrot.slane %v1189, 4
        %v1191 = vmax.f32 %v1189, %v1190
        %v1192 = vrot.slane %v1191, 2
        %v1193 = vmax.f32 %v1191, %v1192
        %v1194 = vrot.slane %v1193, 1
        %v1195 = vmax.f32 %v1193, %v1194
        %v1196 = vsel %vm1188, %v1184, -inf
        %v1197 = vrot.slane %v1196, 4
        %v1198 = vmax.f32 %v1196, %v1197
        %v1199 = vrot.slane %v1198, 2
        %v1200 = vmax.f32 %v1198, %v1199
        %v1201 = vrot.slane %v1200, 1
        %v1202 = vmax.f32 %v1200, %v1201
        %v1203 = vsub.f32 %v1182, %v1195
        %v1204 = vsub.f32 %v1184, %v1202
        %v1205 = vmul.f32 %v1203, 1.442695
        %v1206 = vpow.pop %v1205
        %v1207 = vmul.f32 %v1204, 1.442695
        %v1208 = vpow.pop %v1207
        %v1209 = vsel %vm1188, %v1206, 0.0
        %v1210 = vrot.slane %v1209, 4
        %v1211 = vadd.f32 %v1209, %v1210
        %v1212 = vrot.slane %v1211, 2
        %v1213 = vadd.f32 %v1211, %v1212
        %v1214 = vrot.slane %v1213, 1
        %v1215 = vadd.f32 %v1213, %v1214
        %v1216 = vsel %vm1188, %v1208, 0.0
        %v1217 = vrot.slane %v1216, 4
        %v1218 = vadd.f32 %v1216, %v1217
        %v1219 = vrot.slane %v1218, 2
        %v1220 = vadd.f32 %v1218, %v1219
        %v1221 = vrot.slane %v1220, 1
        %v1222 = vadd.f32 %v1220, %v1221
        %v1223 = vrcp.pop %v1215
        %v1224 = vmul.f32 %v1206, %v1223
        %v1225 = vrcp.pop %v1222
        %v1226 = vmul.f32 %v1208, %v1225
        %v1227 = vlaneseq
        %v1228 = vshrl.u32 %v1227, 7
        %v1229 = vsub.s32 1, %v1228
        %v1230 = vrot.slane %v1224, %v1229
        %v1231 = vlaneseq
        %v1232 = vshrl.u32 %v1231, 7
        %v1233 = vsub.s32 1, %v1232
        %v1234 = vrot.slane %v1226, %v1233
        %v1235 = vmul.f32 %v1018, %v1230
        %v1236 = vmul.f32 %v1019, %v1234
        %v1237 = vmul.f32 %v1020, %v1230
        %v1238 = vmul.f32 %v1021, %v1234
        %v1239 = vadd.f32 %v1235, %v1026
        %v1240 = vadd.f32 %v1236, %v1027
        %v1241 = vadd.f32 %v1237, %v1028
        %v1242 = vadd.f32 %v1238, %v1029
        %v1243 = vpack.c.bf16 %v1241, %v1239
        %v1244 = vpack.c.bf16 %v1242, %v1240
        %v1245 = vlaneseq
        %v1246 = vshrl.u32 %v1245, 7
        %v1247 = vsub.s32 2, %v1246
        %v1248 = vrot.slane %v1224, %v1247
        %v1249 = vlaneseq
        %v1250 = vshrl.u32 %v1249, 7
        %v1251 = vsub.s32 2, %v1250
        %v1252 = vrot.slane %v1226, %v1251
        %v1253 = vmul.f32 %v1018, %v1248
        %v1254 = vmul.f32 %v1019, %v1252
        %v1255 = vmul.f32 %v1020, %v1248
        %v1256 = vmul.f32 %v1021, %v1252
        %v1257 = vadd.f32 %v1253, %v1030
        %v1258 = vadd.f32 %v1254, %v1031
        %v1259 = vadd.f32 %v1255, %v1032
        %v1260 = vadd.f32 %v1256, %v1033
        %v1261 = vpack.c.bf16 %v1259, %v1257
        %v1262 = vpack.c.bf16 %v1260, %v1258
        %v1263 = vld [vmem:[%s12 + $0x10] sm:$0xf]
        %v1264 = vld [vmem:[%s12 + $0x14] sm:$0xf]
        %v1265 = vld [vmem:[%s13 + $0x20] sm:$0xff]
        %v1266 = vld [vmem:[%s13 + $0x28] sm:$0xff]
        %1268 = vset.pattern.permute.xlu0 0
        %1269 = vperm.xlu0 %1268, %v1265
        %v1270 = vpop.permute.xlu0 %1269
        %1273 = vset.pattern.permute.xlu0 0
        %1274 = vperm.xlu0 %1273, %v1266
        %v1275 = vpop.permute.xlu0 %1274
        %v1279 = vunpack.c.l.b16 %v1263
        %v1280 = vunpack.c.l.b16 %v1264
        %v1281 = vpack.c.b16 %v1280, %v1279
        %v1283 = vsel %vm1143, %v1281, 0
        %1285 = vmatprep.subr.bf16.mxu0 %v1244
        %1286 = vmatpush1.bf16.msra.mxu0 %v1243
        %1287 = vmatprep.subr.bf16.mxu0 0
        %1288 = vmatpush1.bf16.msra.mxu0 0
        %1289 = vmatprep.subr.bf16.mxu0 0
        %1290 = vmatpush1.bf16.msra.mxu0 0
        %1291 = vmatprep.subr.bf16.mxu0 0
        %1292 = vmatpush1.bf16.msra.mxu0 0
        %1293 = vmatprep.subr.bf16.mxu0 0
        %1294 = vmatpush1.bf16.msra.mxu0 0
        %1295 = vmatprep.subr.bf16.mxu0 0
        %1296 = vmatpush1.bf16.msra.mxu0 0
        %1297 = vmatprep.subr.bf16.mxu0 0
        %1298 = vmatpush1.bf16.msra.mxu0 0
        %1299 = vmatprep.subr.bf16.mxu0 0
        %1300 = vmatpush1.bf16.msra.mxu0 0
        %1301 = vmatprep.subr.bf16.mxu0 0
        %1302 = vmatpush1.bf16.msra.mxu0 0
        %1303 = vmatprep.subr.bf16.mxu0 0
        %1304 = vmatpush1.bf16.msra.mxu0 0
        %1305 = vmatprep.subr.bf16.mxu0 0
        %1306 = vmatpush1.bf16.msra.mxu0 0
        %1307 = vmatprep.subr.bf16.mxu0 0
        %1308 = vmatpush1.bf16.msra.mxu0 0
        %1309 = vmatprep.subr.bf16.mxu0 0
        %1310 = vmatpush1.bf16.msra.mxu0 0
        %1311 = vmatprep.subr.bf16.mxu0 0
        %1312 = vmatpush1.bf16.msra.mxu0 0
        %1313 = vmatprep.subr.bf16.mxu0 0
        %1314 = vmatpush1.bf16.msra.mxu0 0
        %1315 = vmatprep.subr.bf16.mxu0 0
        %1316 = vmatpush1.bf16.msra.mxu0 0
        %1317 = vmatprep.mubr.bf16.mxu0 0
        %1318 = vmatmul.mubr.bf16.gmra.mrb[0].mxu0 %v1283
        %v1319 = vpop.f32.mrb[0].mxu0
        %v1320 = vadd.f32 %v1270, %v1319
        %v1321 = vpop.f32.mrb[0].mxu0
        %v1322 = vadd.f32 %v1270, %v1321
        %v1323 = vpop.f32.mrb[0].mxu0
        %v1324 = vadd.f32 %v1275, %v1323
        %v1325 = vpop.f32.mrb[0].mxu0
        %v1326 = vadd.f32 %v1275, %v1325
        %1327 = vdwg.mxu0
        %1328 = vmatprep.subr.bf16.mxu0 %v1262
        %1329 = vmatpush1.bf16.msra.mxu0 %v1261
        %1330 = vmatprep.subr.bf16.mxu0 0
        %1331 = vmatpush1.bf16.msra.mxu0 0
        %1332 = vmatprep.subr.bf16.mxu0 0
        %1333 = vmatpush1.bf16.msra.mxu0 0
        %1334 = vmatprep.subr.bf16.mxu0 0
        %1335 = vmatpush1.bf16.msra.mxu0 0
        %1336 = vmatprep.subr.bf16.mxu0 0
        %1337 = vmatpush1.bf16.msra.mxu0 0
        %1338 = vmatprep.subr.bf16.mxu0 0
        %1339 = vmatpush1.bf16.msra.mxu0 0
        %1340 = vmatprep.subr.bf16.mxu0 0
        %1341 = vmatpush1.bf16.msra.mxu0 0
        %1342 = vmatprep.subr.bf16.mxu0 0
        %1343 = vmatpush1.bf16.msra.mxu0 0
        %1344 = vmatprep.subr.bf16.mxu0 0
        %1345 = vmatpush1.bf16.msra.mxu0 0
        %1346 = vmatprep.subr.bf16.mxu0 0
        %1347 = vmatpush1.bf16.msra.mxu0 0
        %1348 = vmatprep.subr.bf16.mxu0 0
        %1349 = vmatpush1.bf16.msra.mxu0 0
        %1350 = vmatprep.subr.bf16.mxu0 0
        %1351 = vmatpush1.bf16.msra.mxu0 0
        %1352 = vmatprep.subr.bf16.mxu0 0
        %1353 = vmatpush1.bf16.msra.mxu0 0
        %1354 = vmatprep.subr.bf16.mxu0 0
        %1355 = vmatpush1.bf16.msra.mxu0 0
        %1356 = vmatprep.subr.bf16.mxu0 0
        %1357 = vmatpush1.bf16.msra.mxu0 0
        %1358 = vmatprep.subr.bf16.mxu0 0
        %1359 = vmatpush1.bf16.msra.mxu0 0
        %1360 = vmatprep.mubr.bf16.mxu0 0
        %1361 = vmatmul.mubr.bf16.gmra.mrb[0].mxu0 %v1283
        %v1362 = vpop.f32.mrb[0].mxu0
        %v1363 = vadd.f32 %v1270, %v1362
        %v1364 = vpop.f32.mrb[0].mxu0
        %v1365 = vadd.f32 %v1270, %v1364
        %v1366 = vpop.f32.mrb[0].mxu0
        %v1367 = vadd.f32 %v1275, %v1366
        %v1368 = vpop.f32.mrb[0].mxu0
        %v1369 = vadd.f32 %v1275, %v1368
        %1370 = vdwg.mxu0
        %v1371 = vmax.f32 %v1320, 0.0
        %v1372 = vmax.f32 %v1322, 0.0
        %v1373 = vmax.f32 %v1363, 0.0
        %v1374 = vmax.f32 %v1365, 0.0
        %v1375 = vmax.f32 %v1324, 0.0
        %v1376 = vmax.f32 %v1326, 0.0
        %v1377 = vmax.f32 %v1367, 0.0
        %v1378 = vmax.f32 %v1369, 0.0
        %v1379 = vld [vmem:[%s994] sm:$0x3]
        %v1380 = vld [vmem:[%s1003] sm:$0x3]
        %v1382 = vlaneseq
        %v1383 = vshrl.u32 %v1382, 7
        %v1384 = vsub.s32 0, %v1383
        %v1385 = vrot.slane %v1379, %v1384
        %v1386 = vlaneseq
        %v1387 = vshrl.u32 %v1386, 7
        %v1388 = vsub.s32 1, %v1387
        %v1389 = vrot.slane %v1379, %v1388
        %v1392 = vmul.f32 %v1034, %v1385
        %v1393 = vmul.f32 %v1035, %v1389
        %v1394 = vmul.f32 %v1036, %v1385
        %v1395 = vmul.f32 %v1037, %v1389
        %v1396 = vadd.f32 %v1022, %v1392
        %v1397 = vadd.f32 %v1023, %v1393
        %v1398 = vadd.f32 %v1024, %v1394
        %v1399 = vadd.f32 %v1025, %v1395
        %v1400 = vpack.c.bf16 %v1398, %v1396
        %v1401 = vpack.c.bf16 %v1399, %v1397
        %v1402 = vmul.f32 %v1038, %v1385
        %v1403 = vmul.f32 %v1039, %v1389
        %v1404 = vmul.f32 %v1040, %v1385
        %v1405 = vmul.f32 %v1041, %v1389
        %v1406 = vadd.f32 %v1022, %v1402
        %v1407 = vadd.f32 %v1023, %v1403
        %v1408 = vadd.f32 %v1024, %v1404
        %v1409 = vadd.f32 %v1025, %v1405
        %v1410 = vpack.c.bf16 %v1408, %v1406
        %v1411 = vpack.c.bf16 %v1409, %v1407
        %v1412 = vmul.f32 %v1042, %v1385
        %v1413 = vmul.f32 %v1043, %v1389
        %v1414 = vmul.f32 %v1044, %v1385
        %v1415 = vmul.f32 %v1045, %v1389
        %v1416 = vadd.f32 %v1022, %v1412
        %v1417 = vadd.f32 %v1023, %v1413
        %v1418 = vadd.f32 %v1024, %v1414
        %v1419 = vadd.f32 %v1025, %v1415
        %v1420 = vpack.c.bf16 %v1418, %v1416
        %v1421 = vpack.c.bf16 %v1419, %v1417
        %v1422 = vmul.f32 %v1046, %v1385
        %v1423 = vmul.f32 %v1047, %v1389
        %v1424 = vmul.f32 %v1048, %v1385
        %v1425 = vmul.f32 %v1049, %v1389
        %v1426 = vadd.f32 %v1022, %v1422
        %v1427 = vadd.f32 %v1023, %v1423
        %v1428 = vadd.f32 %v1024, %v1424
        %v1429 = vadd.f32 %v1025, %v1425
        %v1430 = vpack.c.bf16 %v1428, %v1426
        %v1431 = vpack.c.bf16 %v1429, %v1427
        %v1432 = vld [vmem:[%s12 + $0x18] sm:$0xf]
        %v1433 = vld [vmem:[%s12 + $0x1c] sm:$0xf]
        %v1434 = vld [vmem:[%s13 + $0x30] sm:$0xff]
        %v1435 = vld [vmem:[%s13 + $0x38] sm:$0xff]
        %1437 = vset.pattern.permute.xlu0 0
        %1438 = vperm.xlu0 %1437, %v1434
        %v1439 = vpop.permute.xlu0 %1438
        %1442 = vset.pattern.permute.xlu0 0
        %1443 = vperm.xlu0 %1442, %v1435
        %v1444 = vpop.permute.xlu0 %1443
        %v1448 = vunpack.c.l.b16 %v1432
        %v1449 = vunpack.c.l.b16 %v1433
        %v1450 = vpack.c.b16 %v1449, %v1448
        %v1452 = vsel %vm1143, %v1450, 0
        %1454 = vmatprep.subr.bf16.mxu0 %v1401
        %1455 = vmatpush1.bf16.msra.mxu0 %v1400
        %1456 = vmatprep.subr.bf16.mxu0 0
        %1457 = vmatpush1.bf16.msra.mxu0 0
        %1458 = vmatprep.subr.bf16.mxu0 0
        %1459 = vmatpush1.bf16.msra.mxu0 0
        %1460 = vmatprep.subr.bf16.mxu0 0
        %1461 = vmatpush1.bf16.msra.mxu0 0
        %1462 = vmatprep.subr.bf16.mxu0 0
        %1463 = vmatpush1.bf16.msra.mxu0 0
        %1464 = vmatprep.subr.bf16.mxu0 0
        %1465 = vmatpush1.bf16.msra.mxu0 0
        %1466 = vmatprep.subr.bf16.mxu0 0
        %1467 = vmatpush1.bf16.msra.mxu0 0
        %1468 = vmatprep.subr.bf16.mxu0 0
        %1469 = vmatpush1.bf16.msra.mxu0 0
        %1470 = vmatprep.subr.bf16.mxu0 0
        %1471 = vmatpush1.bf16.msra.mxu0 0
        %1472 = vmatprep.subr.bf16.mxu0 0
        %1473 = vmatpush1.bf16.msra.mxu0 0
        %1474 = vmatprep.subr.bf16.mxu0 0
        %1475 = vmatpush1.bf16.msra.mxu0 0
        %1476 = vmatprep.subr.bf16.mxu0 0
        %1477 = vmatpush1.bf16.msra.mxu0 0
        %1478 = vmatprep.subr.bf16.mxu0 0
        %1479 = vmatpush1.bf16.msra.mxu0 0
        %1480 = vmatprep.subr.bf16.mxu0 0
        %1481 = vmatpush1.bf16.msra.mxu0 0
        %1482 = vmatprep.subr.bf16.mxu0 0
        %1483 = vmatpush1.bf16.msra.mxu0 0
        %1484 = vmatprep.subr.bf16.mxu0 0
        %1485 = vmatpush1.bf16.msra.mxu0 0
        %1486 = vmatprep.mubr.bf16.mxu0 0
        %1487 = vmatmul.mubr.bf16.gmra.mrb[0].mxu0 %v1452
        %v1488 = vpop.f32.mrb[0].mxu0
        %v1489 = vadd.f32 %v1439, %v1488
        %v1490 = vpop.f32.mrb[0].mxu0
        %v1491 = vadd.f32 %v1439, %v1490
        %v1492 = vpop.f32.mrb[0].mxu0
        %v1493 = vadd.f32 %v1444, %v1492
        %v1494 = vpop.f32.mrb[0].mxu0
        %v1495 = vadd.f32 %v1444, %v1494
        %1496 = vdwg.mxu0
        %1497 = vmatprep.subr.bf16.mxu0 %v1411
        %1498 = vmatpush1.bf16.msra.mxu0 %v1410
        %1499 = vmatprep.subr.bf16.mxu0 0
        %1500 = vmatpush1.bf16.msra.mxu0 0
        %1501 = vmatprep.subr.bf16.mxu0 0
        %1502 = vmatpush1.bf16.msra.mxu0 0
        %1503 = vmatprep.subr.bf16.mxu0 0
        %1504 = vmatpush1.bf16.msra.mxu0 0
        %1505 = vmatprep.subr.bf16.mxu0 0
        %1506 = vmatpush1.bf16.msra.mxu0 0
        %1507 = vmatprep.subr.bf16.mxu0 0
        %1508 = vmatpush1.bf16.msra.mxu0 0
        %1509 = vmatprep.subr.bf16.mxu0 0
        %1510 = vmatpush1.bf16.msra.mxu0 0
        %1511 = vmatprep.subr.bf16.mxu0 0
        %1512 = vmatpush1.bf16.msra.mxu0 0
        %1513 = vmatprep.subr.bf16.mxu0 0
        %1514 = vmatpush1.bf16.msra.mxu0 0
        %1515 = vmatprep.subr.bf16.mxu0 0
        %1516 = vmatpush1.bf16.msra.mxu0 0
        %1517 = vmatprep.subr.bf16.mxu0 0
        %1518 = vmatpush1.bf16.msra.mxu0 0
        %1519 = vmatprep.subr.bf16.mxu0 0
        %1520 = vmatpush1.bf16.msra.mxu0 0
        %1521 = vmatprep.subr.bf16.mxu0 0
        %1522 = vmatpush1.bf16.msra.mxu0 0
        %1523 = vmatprep.subr.bf16.mxu0 0
        %1524 = vmatpush1.bf16.msra.mxu0 0
        %1525 = vmatprep.subr.bf16.mxu0 0
        %1526 = vmatpush1.bf16.msra.mxu0 0
        %1527 = vmatprep.subr.bf16.mxu0 0
        %1528 = vmatpush1.bf16.msra.mxu0 0
        %1529 = vmatprep.mubr.bf16.mxu0 0
        %1530 = vmatmul.mubr.bf16.gmra.mrb[0].mxu0 %v1452
        %v1531 = vpop.f32.mrb[0].mxu0
        %v1532 = vadd.f32 %v1439, %v1531
        %v1533 = vpop.f32.mrb[0].mxu0
        %v1534 = vadd.f32 %v1439, %v1533
        %v1535 = vpop.f32.mrb[0].mxu0
        %v1536 = vadd.f32 %v1444, %v1535
        %v1537 = vpop.f32.mrb[0].mxu0
        %v1538 = vadd.f32 %v1444, %v1537
        %1539 = vdwg.mxu0
        %1540 = vmatprep.subr.bf16.mxu0 %v1421
        %1541 = vmatpush1.bf16.msra.mxu0 %v1420
        %1542 = vmatprep.subr.bf16.mxu0 0
        %1543 = vmatpush1.bf16.msra.mxu0 0
        %1544 = vmatprep.subr.bf16.mxu0 0
        %1545 = vmatpush1.bf16.msra.mxu0 0
        %1546 = vmatprep.subr.bf16.mxu0 0
        %1547 = vmatpush1.bf16.msra.mxu0 0
        %1548 = vmatprep.subr.bf16.mxu0 0
        %1549 = vmatpush1.bf16.msra.mxu0 0
        %1550 = vmatprep.subr.bf16.mxu0 0
        %1551 = vmatpush1.bf16.msra.mxu0 0
        %1552 = vmatprep.subr.bf16.mxu0 0
        %1553 = vmatpush1.bf16.msra.mxu0 0
        %1554 = vmatprep.subr.bf16.mxu0 0
        %1555 = vmatpush1.bf16.msra.mxu0 0
        %1556 = vmatprep.subr.bf16.mxu0 0
        %1557 = vmatpush1.bf16.msra.mxu0 0
        %1558 = vmatprep.subr.bf16.mxu0 0
        %1559 = vmatpush1.bf16.msra.mxu0 0
        %1560 = vmatprep.subr.bf16.mxu0 0
        %1561 = vmatpush1.bf16.msra.mxu0 0
        %1562 = vmatprep.subr.bf16.mxu0 0
        %1563 = vmatpush1.bf16.msra.mxu0 0
        %1564 = vmatprep.subr.bf16.mxu0 0
        %1565 = vmatpush1.bf16.msra.mxu0 0
        %1566 = vmatprep.subr.bf16.mxu0 0
        %1567 = vmatpush1.bf16.msra.mxu0 0
        %1568 = vmatprep.subr.bf16.mxu0 0
        %1569 = vmatpush1.bf16.msra.mxu0 0
        %1570 = vmatprep.subr.bf16.mxu0 0
        %1571 = vmatpush1.bf16.msra.mxu0 0
        %1572 = vmatprep.mubr.bf16.mxu0 0
        %1573 = vmatmul.mubr.bf16.gmra.mrb[0].mxu0 %v1452
        %v1574 = vpop.f32.mrb[0].mxu0
        %v1575 = vadd.f32 %v1439, %v1574
        %v1576 = vpop.f32.mrb[0].mxu0
        %v1577 = vadd.f32 %v1439, %v1576
        %v1578 = vpop.f32.mrb[0].mxu0
        %v1579 = vadd.f32 %v1444, %v1578
        %v1580 = vpop.f32.mrb[0].mxu0
        %v1581 = vadd.f32 %v1444, %v1580
        %1582 = vdwg.mxu0
        %1583 = vmatprep.subr.bf16.mxu0 %v1431
        %1584 = vmatpush1.bf16.msra.mxu0 %v1430
        %1585 = vmatprep.subr.bf16.mxu0 0
        %1586 = vmatpush1.bf16.msra.mxu0 0
        %1587 = vmatprep.subr.bf16.mxu0 0
        %1588 = vmatpush1.bf16.msra.mxu0 0
        %1589 = vmatprep.subr.bf16.mxu0 0
        %1590 = vmatpush1.bf16.msra.mxu0 0
        %1591 = vmatprep.subr.bf16.mxu0 0
        %1592 = vmatpush1.bf16.msra.mxu0 0
        %1593 = vmatprep.subr.bf16.mxu0 0
        %1594 = vmatpush1.bf16.msra.mxu0 0
        %1595 = vmatprep.subr.bf16.mxu0 0
        %1596 = vmatpush1.bf16.msra.mxu0 0
        %1597 = vmatprep.subr.bf16.mxu0 0
        %1598 = vmatpush1.bf16.msra.mxu0 0
        %1599 = vmatprep.subr.bf16.mxu0 0
        %1600 = vmatpush1.bf16.msra.mxu0 0
        %1601 = vmatprep.subr.bf16.mxu0 0
        %1602 = vmatpush1.bf16.msra.mxu0 0
        %1603 = vmatprep.subr.bf16.mxu0 0
        %1604 = vmatpush1.bf16.msra.mxu0 0
        %1605 = vmatprep.subr.bf16.mxu0 0
        %1606 = vmatpush1.bf16.msra.mxu0 0
        %1607 = vmatprep.subr.bf16.mxu0 0
        %1608 = vmatpush1.bf16.msra.mxu0 0
        %1609 = vmatprep.subr.bf16.mxu0 0
        %1610 = vmatpush1.bf16.msra.mxu0 0
        %1611 = vmatprep.subr.bf16.mxu0 0
        %1612 = vmatpush1.bf16.msra.mxu0 0
        %1613 = vmatprep.subr.bf16.mxu0 0
        %1614 = vmatpush1.bf16.msra.mxu0 0
        %1615 = vmatprep.mubr.bf16.mxu0 0
        %1616 = vmatmul.mubr.bf16.gmra.mrb[0].mxu0 %v1452
        %v1617 = vpop.f32.mrb[0].mxu0
        %v1618 = vadd.f32 %v1439, %v1617
        %v1619 = vpop.f32.mrb[0].mxu0
        %v1620 = vadd.f32 %v1439, %v1619
        %v1621 = vpop.f32.mrb[0].mxu0
        %v1622 = vadd.f32 %v1444, %v1621
        %v1623 = vpop.f32.mrb[0].mxu0
        %v1624 = vadd.f32 %v1444, %v1623
        %1625 = vdwg.mxu0
        %v1626 = vmax.f32 %v1489, 0.0
        %v1627 = vmax.f32 %v1491, 0.0
        %v1628 = vmax.f32 %v1532, 0.0
        %v1629 = vmax.f32 %v1534, 0.0
        %v1630 = vmax.f32 %v1575, 0.0
        %v1631 = vmax.f32 %v1577, 0.0
        %v1632 = vmax.f32 %v1618, 0.0
        %v1633 = vmax.f32 %v1620, 0.0
        %v1634 = vmax.f32 %v1493, 0.0
        %v1635 = vmax.f32 %v1495, 0.0
        %v1636 = vmax.f32 %v1536, 0.0
        %v1637 = vmax.f32 %v1538, 0.0
        %v1638 = vmax.f32 %v1579, 0.0
        %v1639 = vmax.f32 %v1581, 0.0
        %v1640 = vmax.f32 %v1622, 0.0
        %v1641 = vmax.f32 %v1624, 0.0
        %v1642 = vadd.f32 %v1626, %v1628
        %v1643 = vadd.f32 %v1627, %v1629
        %v1644 = vadd.f32 %v1634, %v1636
        %v1645 = vadd.f32 %v1635, %v1637
        %v1646 = vadd.f32 %v1642, %v1630
        %v1647 = vadd.f32 %v1643, %v1631
        %v1648 = vadd.f32 %v1644, %v1638
        %v1649 = vadd.f32 %v1645, %v1639
        %v1650 = vadd.f32 %v1646, %v1632
        %v1651 = vadd.f32 %v1647, %v1633
        %v1652 = vadd.f32 %v1648, %v1640
        %v1653 = vadd.f32 %v1649, %v1641
        %v1655 = vlaneseq
        %v1656 = vshrl.u32 %v1655, 7
        %v1657 = vsub.s32 0, %v1656
        %v1658 = vrot.slane %v1380, %v1657
        %v1659 = vlaneseq
        %v1660 = vshrl.u32 %v1659, 7
        %v1661 = vsub.s32 1, %v1660
        %v1662 = vrot.slane %v1380, %v1661
        %v1665 = vmul.f32 %v1050, %v1658
        %v1666 = vmul.f32 %v1051, %v1662
        %v1667 = vmul.f32 %v1052, %v1658
        %v1668 = vmul.f32 %v1053, %v1662
        %v1669 = vadd.f32 %v1026, %v1665
        %v1670 = vadd.f32 %v1027, %v1666
        %v1671 = vadd.f32 %v1028, %v1667
        %v1672 = vadd.f32 %v1029, %v1668
        %v1673 = vpack.c.bf16 %v1671, %v1669
        %v1674 = vpack.c.bf16 %v1672, %v1670
        %v1675 = vmul.f32 %v1054, %v1658
        %v1676 = vmul.f32 %v1055, %v1662
        %v1677 = vmul.f32 %v1056, %v1658
        %v1678 = vmul.f32 %v1057, %v1662
        %v1679 = vadd.f32 %v1026, %v1675
        %v1680 = vadd.f32 %v1027, %v1676
        %v1681 = vadd.f32 %v1028, %v1677
        %v1682 = vadd.f32 %v1029, %v1678
        %v1683 = vpack.c.bf16 %v1681, %v1679
        %v1684 = vpack.c.bf16 %v1682, %v1680
        %v1685 = vld [vmem:[%s12 + $0x20] sm:$0xf]
        %v1686 = vld [vmem:[%s12 + $0x24] sm:$0xf]
        %v1687 = vld [vmem:[%s13 + $0x40] sm:$0xff]
        %v1688 = vld [vmem:[%s13 + $0x48] sm:$0xff]
        %1690 = vset.pattern.permute.xlu0 0
        %1691 = vperm.xlu0 %1690, %v1687
        %v1692 = vpop.permute.xlu0 %1691
        %1695 = vset.pattern.permute.xlu0 0
        %1696 = vperm.xlu0 %1695, %v1688
        %v1697 = vpop.permute.xlu0 %1696
        %v1701 = vunpack.c.l.b16 %v1685
        %v1702 = vunpack.c.l.b16 %v1686
        %v1703 = vpack.c.b16 %v1702, %v1701
        %v1705 = vsel %vm1143, %v1703, 0
        %1707 = vmatprep.subr.bf16.mxu0 %v1674
        %1708 = vmatpush1.bf16.msra.mxu0 %v1673
        %1709 = vmatprep.subr.bf16.mxu0 0
        %1710 = vmatpush1.bf16.msra.mxu0 0
        %1711 = vmatprep.subr.bf16.mxu0 0
        %1712 = vmatpush1.bf16.msra.mxu0 0
        %1713 = vmatprep.subr.bf16.mxu0 0
        %1714 = vmatpush1.bf16.msra.mxu0 0
        %1715 = vmatprep.subr.bf16.mxu0 0
        %1716 = vmatpush1.bf16.msra.mxu0 0
        %1717 = vmatprep.subr.bf16.mxu0 0
        %1718 = vmatpush1.bf16.msra.mxu0 0
        %1719 = vmatprep.subr.bf16.mxu0 0
        %1720 = vmatpush1.bf16.msra.mxu0 0
        %1721 = vmatprep.subr.bf16.mxu0 0
        %1722 = vmatpush1.bf16.msra.mxu0 0
        %1723 = vmatprep.subr.bf16.mxu0 0
        %1724 = vmatpush1.bf16.msra.mxu0 0
        %1725 = vmatprep.subr.bf16.mxu0 0
        %1726 = vmatpush1.bf16.msra.mxu0 0
        %1727 = vmatprep.subr.bf16.mxu0 0
        %1728 = vmatpush1.bf16.msra.mxu0 0
        %1729 = vmatprep.subr.bf16.mxu0 0
        %1730 = vmatpush1.bf16.msra.mxu0 0
        %1731 = vmatprep.subr.bf16.mxu0 0
        %1732 = vmatpush1.bf16.msra.mxu0 0
        %1733 = vmatprep.subr.bf16.mxu0 0
        %1734 = vmatpush1.bf16.msra.mxu0 0
        %1735 = vmatprep.subr.bf16.mxu0 0
        %1736 = vmatpush1.bf16.msra.mxu0 0
        %1737 = vmatprep.subr.bf16.mxu0 0
        %1738 = vmatpush1.bf16.msra.mxu0 0
        %1739 = vmatprep.mubr.bf16.mxu0 0
        %1740 = vmatmul.mubr.bf16.gmra.mrb[0].mxu0 %v1705
        %v1741 = vpop.f32.mrb[0].mxu0
        %v1742 = vadd.f32 %v1692, %v1741
        %v1743 = vpop.f32.mrb[0].mxu0
        %v1744 = vadd.f32 %v1692, %v1743
        %v1745 = vpop.f32.mrb[0].mxu0
        %v1746 = vadd.f32 %v1697, %v1745
        %v1747 = vpop.f32.mrb[0].mxu0
        %v1748 = vadd.f32 %v1697, %v1747
        %1749 = vdwg.mxu0
        %1750 = vmatprep.subr.bf16.mxu0 %v1684
        %1751 = vmatpush1.bf16.msra.mxu0 %v1683
        %1752 = vmatprep.subr.bf16.mxu0 0
        %1753 = vmatpush1.bf16.msra.mxu0 0
        %1754 = vmatprep.subr.bf16.mxu0 0
        %1755 = vmatpush1.bf16.msra.mxu0 0
        %1756 = vmatprep.subr.bf16.mxu0 0
        %1757 = vmatpush1.bf16.msra.mxu0 0
        %1758 = vmatprep.subr.bf16.mxu0 0
        %1759 = vmatpush1.bf16.msra.mxu0 0
        %1760 = vmatprep.subr.bf16.mxu0 0
        %1761 = vmatpush1.bf16.msra.mxu0 0
        %1762 = vmatprep.subr.bf16.mxu0 0
        %1763 = vmatpush1.bf16.msra.mxu0 0
        %1764 = vmatprep.subr.bf16.mxu0 0
        %1765 = vmatpush1.bf16.msra.mxu0 0
        %1766 = vmatprep.subr.bf16.mxu0 0
        %1767 = vmatpush1.bf16.msra.mxu0 0
        %1768 = vmatprep.subr.bf16.mxu0 0
        %1769 = vmatpush1.bf16.msra.mxu0 0
        %1770 = vmatprep.subr.bf16.mxu0 0
        %1771 = vmatpush1.bf16.msra.mxu0 0
        %1772 = vmatprep.subr.bf16.mxu0 0
        %1773 = vmatpush1.bf16.msra.mxu0 0
        %1774 = vmatprep.subr.bf16.mxu0 0
        %1775 = vmatpush1.bf16.msra.mxu0 0
        %1776 = vmatprep.subr.bf16.mxu0 0
        %1777 = vmatpush1.bf16.msra.mxu0 0
        %1778 = vmatprep.subr.bf16.mxu0 0
        %1779 = vmatpush1.bf16.msra.mxu0 0
        %1780 = vmatprep.subr.bf16.mxu0 0
        %1781 = vmatpush1.bf16.msra.mxu0 0
        %1782 = vmatprep.mubr.bf16.mxu0 0
        %1783 = vmatmul.mubr.bf16.gmra.mrb[0].mxu0 %v1705
        %v1784 = vpop.f32.mrb[0].mxu0
        %v1785 = vadd.f32 %v1692, %v1784
        %v1786 = vpop.f32.mrb[0].mxu0
        %v1787 = vadd.f32 %v1692, %v1786
        %v1788 = vpop.f32.mrb[0].mxu0
        %v1789 = vadd.f32 %v1697, %v1788
        %v1790 = vpop.f32.mrb[0].mxu0
        %v1791 = vadd.f32 %v1697, %v1790
        %1792 = vdwg.mxu0
        %v1793 = vmax.f32 %v1742, 0.0
        %v1794 = vmax.f32 %v1744, 0.0
        %v1795 = vmax.f32 %v1785, 0.0
        %v1796 = vmax.f32 %v1787, 0.0
        %v1797 = vmax.f32 %v1746, 0.0
        %v1798 = vmax.f32 %v1748, 0.0
        %v1799 = vmax.f32 %v1789, 0.0
        %v1800 = vmax.f32 %v1791, 0.0
        %v1801 = vadd.f32 %v1793, %v1795
        %v1802 = vadd.f32 %v1794, %v1796
        %v1803 = vadd.f32 %v1797, %v1799
        %v1804 = vadd.f32 %v1798, %v1800
        %v1805 = vadd.f32 %v1371, %v1650
        %v1806 = vadd.f32 %v1372, %v1651
        %v1807 = vadd.f32 %v1375, %v1652
        %v1808 = vadd.f32 %v1376, %v1653
        %v1809 = vadd.f32 %v1373, %v1801
        %v1810 = vadd.f32 %v1374, %v1802
        %v1811 = vadd.f32 %v1377, %v1803
        %v1812 = vadd.f32 %v1378, %v1804
        %v1813 = vpack.c.bf16 %v1807, %v1805
        %v1814 = vpack.c.bf16 %v1808, %v1806
        %v1815 = vpack.c.bf16 %v1811, %v1809
        %v1816 = vpack.c.bf16 %v1812, %v1810
        %v1817 = vpack.c.bf16 %v1024, %v1022
        %v1818 = vpack.c.bf16 %v1025, %v1023
        %v1819 = vld [vmem:[%s12 + $0x28] sm:$0xf]
        %v1820 = vld [vmem:[%s12 + $0x2c] sm:$0xf]
        %v1821 = vld [vmem:[%s12 + $0x30] sm:$0xf]
        %v1822 = vld [vmem:[%s12 + $0x34] sm:$0xf]
        %v1823 = vld [vmem:[%s12 + $0x38] sm:$0xf]
        %v1824 = vld [vmem:[%s12 + $0x3c] sm:$0xf]
        %v1825 = vld [vmem:[%s12 + $0x40] sm:$0xf]
        %v1826 = vld [vmem:[%s12 + $0x44] sm:$0xf]
        %v1827 = vld [vmem:[%s13 + $0x50] sm:$0xff]
        %v1828 = vld [vmem:[%s13 + $0x58] sm:$0xff]
        %v1829 = vld [vmem:[%s13 + $0x60] sm:$0xff]
        %v1830 = vld [vmem:[%s13 + $0x68] sm:$0xff]
        %v1831 = vld [vmem:[%s13 + $0x70] sm:$0xff]
        %v1832 = vld [vmem:[%s13 + $0x78] sm:$0xff]
        %v1833 = vld [vmem:[%s13 + $0x80] sm:$0xff]
        %v1834 = vld [vmem:[%s13 + $0x88] sm:$0xff]
        %1836 = vset.pattern.permute.xlu0 0
        %1837 = vperm.xlu0 %1836, %v1827
        %v1838 = vpop.permute.xlu0 %1837
        %1841 = vset.pattern.permute.xlu0 0
        %1842 = vperm.xlu0 %1841, %v1828
        %v1843 = vpop.permute.xlu0 %1842
        %1846 = vset.pattern.permute.xlu0 0
        %1847 = vperm.xlu0 %1846, %v1829
        %v1848 = vpop.permute.xlu0 %1847
        %1851 = vset.pattern.permute.xlu0 0
        %1852 = vperm.xlu0 %1851, %v1830
        %v1853 = vpop.permute.xlu0 %1852
        %1856 = vset.pattern.permute.xlu0 0
        %1857 = vperm.xlu0 %1856, %v1831
        %v1858 = vpop.permute.xlu0 %1857
        %1861 = vset.pattern.permute.xlu0 0
        %1862 = vperm.xlu0 %1861, %v1832
        %v1863 = vpop.permute.xlu0 %1862
        %1866 = vset.pattern.permute.xlu0 0
        %1867 = vperm.xlu0 %1866, %v1833
        %v1868 = vpop.permute.xlu0 %1867
        %1871 = vset.pattern.permute.xlu0 0
        %1872 = vperm.xlu0 %1871, %v1834
        %v1873 = vpop.permute.xlu0 %1872
        %v1883 = vunpack.c.l.b16 %v1819
        %v1884 = vunpack.c.l.b16 %v1820
        %v1885 = vunpack.c.l.b16 %v1821
        %v1886 = vunpack.c.l.b16 %v1822
        %v1887 = vunpack.c.l.b16 %v1823
        %v1888 = vunpack.c.l.b16 %v1824
        %v1889 = vunpack.c.l.b16 %v1825
        %v1890 = vunpack.c.l.b16 %v1826
        %v1891 = vpack.c.b16 %v1884, %v1883
        %v1892 = vpack.c.b16 %v1886, %v1885
        %v1893 = vpack.c.b16 %v1888, %v1887
        %v1894 = vpack.c.b16 %v1890, %v1889
        %vm1895 = vcmask 523264
        %v1897 = vsel %vm1895, %v1891, 0
        %v1900 = vsel %vm1895, %v1892, 0
        %v1903 = vsel %vm1895, %v1893, 0
        %v1906 = vsel %vm1895, %v1894, 0
        %1908 = vmatprep.subr.bf16.mxu0 %v1814
        %1909 = vmatpush1.bf16.msra.mxu0 %v1813
        %1910 = vmatprep.subr.bf16.mxu0 %v1818
        %1911 = vmatpush1.bf16.msra.mxu0 %v1817
        %1912 = vmatprep.subr.bf16.mxu0 %v1816
        %1913 = vmatpush1.bf16.msra.mxu0 %v1815
        %1914 = vmatprep.subr.bf16.mxu0 %v1061
        %1915 = vmatpush1.bf16.msra.mxu0 %v1060
        %1916 = vmatprep.subr.bf16.mxu0 0
        %1917 = vmatpush1.bf16.msra.mxu0 0
        %1918 = vmatprep.subr.bf16.mxu0 0
        %1919 = vmatpush1.bf16.msra.mxu0 0
        %1920 = vmatprep.subr.bf16.mxu0 0
        %1921 = vmatpush1.bf16.msra.mxu0 0
        %1922 = vmatprep.subr.bf16.mxu0 0
        %1923 = vmatpush1.bf16.msra.mxu0 0
        %1924 = vmatprep.subr.bf16.mxu0 0
        %1925 = vmatpush1.bf16.msra.mxu0 0
        %1926 = vmatprep.subr.bf16.mxu0 0
        %1927 = vmatpush1.bf16.msra.mxu0 0
        %1928 = vmatprep.subr.bf16.mxu0 0
        %1929 = vmatpush1.bf16.msra.mxu0 0
        %1930 = vmatprep.subr.bf16.mxu0 0
        %1931 = vmatpush1.bf16.msra.mxu0 0
        %1932 = vmatprep.subr.bf16.mxu0 0
        %1933 = vmatpush1.bf16.msra.mxu0 0
        %1934 = vmatprep.subr.bf16.mxu0 0
        %1935 = vmatpush1.bf16.msra.mxu0 0
        %1936 = vmatprep.subr.bf16.mxu0 0
        %1937 = vmatpush1.bf16.msra.mxu0 0
        %1938 = vmatprep.subr.bf16.mxu0 0
        %1939 = vmatpush1.bf16.msra.mxu0 0
        %1940 = vmatprep.mubr.bf16.mxu0 0
        %1941 = vmatmul.mubr.bf16.gmra.mrb[0].mxu0 %v1897
        %v1942 = vpop.f32.mrb[0].mxu0
        %v1943 = vadd.f32 %v1838, %v1942
        %v1944 = vpop.f32.mrb[0].mxu0
        %v1945 = vadd.f32 %v1838, %v1944
        %v1946 = vpop.f32.mrb[0].mxu0
        %v1947 = vadd.f32 %v1843, %v1946
        %v1948 = vpop.f32.mrb[0].mxu0
        %v1949 = vadd.f32 %v1843, %v1948
        %1950 = vmatprep.mubr.bf16.mxu0 0
        %1951 = vmatmul.mubr.bf16.gmra.mrb[0].mxu0 %v1900
        %v1952 = vpop.f32.mrb[0].mxu0
        %v1953 = vadd.f32 %v1848, %v1952
        %v1954 = vpop.f32.mrb[0].mxu0
        %v1955 = vadd.f32 %v1848, %v1954
        %v1956 = vpop.f32.mrb[0].mxu0
        %v1957 = vadd.f32 %v1853, %v1956
        %v1958 = vpop.f32.mrb[0].mxu0
        %v1959 = vadd.f32 %v1853, %v1958
        %1960 = vmatprep.mubr.bf16.mxu0 0
        %1961 = vmatmul.mubr.bf16.gmra.mrb[0].mxu0 %v1903
        %v1962 = vpop.f32.mrb[0].mxu0
        %v1963 = vadd.f32 %v1858, %v1962
        %v1964 = vpop.f32.mrb[0].mxu0
        %v1965 = vadd.f32 %v1858, %v1964
        %v1966 = vpop.f32.mrb[0].mxu0
        %v1967 = vadd.f32 %v1863, %v1966
        %v1968 = vpop.f32.mrb[0].mxu0
        %v1969 = vadd.f32 %v1863, %v1968
        %1970 = vmatprep.mubr.bf16.mxu0 0
        %1971 = vmatmul.mubr.bf16.gmra.mrb[0].mxu0 %v1906
        %v1972 = vpop.f32.mrb[0].mxu0
        %v1973 = vadd.f32 %v1868, %v1972
        %v1974 = vpop.f32.mrb[0].mxu0
        %v1975 = vadd.f32 %v1868, %v1974
        %v1976 = vpop.f32.mrb[0].mxu0
        %v1977 = vadd.f32 %v1873, %v1976
        %v1978 = vpop.f32.mrb[0].mxu0
        %v1979 = vadd.f32 %v1873, %v1978
        %1980 = vdwg.mxu0
        %v1981 = vxor.u32 %v1943, 2147483648
        %v1982 = vxor.u32 %v1945, 2147483648
        %v1983 = vxor.u32 %v1947, 2147483648
        %v1984 = vxor.u32 %v1949, 2147483648
        %v1985 = vmul.f32 %v1981, 1.442695
        %v1986 = vpow.pop %v1985
        %v1987 = vmul.f32 %v1982, 1.442695
        %v1988 = vpow.pop %v1987
        %v1989 = vmul.f32 %v1983, 1.442695
        %v1990 = vpow.pop %v1989
        %v1991 = vmul.f32 %v1984, 1.442695
        %v1992 = vpow.pop %v1991
        %v1993 = vadd.f32 %v1986, 1.0
        %v1994 = vadd.f32 %v1988, 1.0
        %v1995 = vadd.f32 %v1990, 1.0
        %v1996 = vadd.f32 %v1992, 1.0
        %v1997 = vrcp.pop %v1993
        %v1998 = vmul.f32 1.0, %v1997
        %v1999 = vrcp.pop %v1994
        %v2000 = vmul.f32 1.0, %v1999
        %v2001 = vrcp.pop %v1995
        %v2002 = vmul.f32 1.0, %v2001
        %v2003 = vrcp.pop %v1996
        %v2004 = vmul.f32 1.0, %v2003
        %v2005 = vxor.u32 %v1953, 2147483648
        %v2006 = vxor.u32 %v1955, 2147483648
        %v2007 = vxor.u32 %v1957, 2147483648
        %v2008 = vxor.u32 %v1959, 2147483648
        %v2009 = vmul.f32 %v2005, 1.442695
        %v2010 = vpow.pop %v2009
        %v2011 = vmul.f32 %v2006, 1.442695
        %v2012 = vpow.pop %v2011
        %v2013 = vmul.f32 %v2007, 1.442695
        %v2014 = vpow.pop %v2013
        %v2015 = vmul.f32 %v2008, 1.442695
        %v2016 = vpow.pop %v2015
        %v2017 = vadd.f32 %v2010, 1.0
        %v2018 = vadd.f32 %v2012, 1.0
        %v2019 = vadd.f32 %v2014, 1.0
        %v2020 = vadd.f32 %v2016, 1.0
        %v2021 = vrcp.pop %v2017
        %v2022 = vmul.f32 1.0, %v2021
        %v2023 = vrcp.pop %v2018
        %v2024 = vmul.f32 1.0, %v2023
        %v2025 = vrcp.pop %v2019
        %v2026 = vmul.f32 1.0, %v2025
        %v2027 = vrcp.pop %v2020
        %v2028 = vmul.f32 1.0, %v2027
        %v2029 = vxor.u32 %v1963, 2147483648
        %v2030 = vxor.u32 %v1965, 2147483648
        %v2031 = vxor.u32 %v1967, 2147483648
        %v2032 = vxor.u32 %v1969, 2147483648
        %v2033 = vmul.f32 %v2029, 1.442695
        %v2034 = vpow.pop %v2033
        %v2035 = vmul.f32 %v2030, 1.442695
        %v2036 = vpow.pop %v2035
        %v2037 = vmul.f32 %v2031, 1.442695
        %v2038 = vpow.pop %v2037
        %v2039 = vmul.f32 %v2032, 1.442695
        %v2040 = vpow.pop %v2039
        %v2041 = vadd.f32 %v2034, 1.0
        %v2042 = vadd.f32 %v2036, 1.0
        %v2043 = vadd.f32 %v2038, 1.0
        %v2044 = vadd.f32 %v2040, 1.0
        %v2045 = vrcp.pop %v2041
        %v2046 = vmul.f32 1.0, %v2045
        %v2047 = vrcp.pop %v2042
        %v2048 = vmul.f32 1.0, %v2047
        %v2049 = vrcp.pop %v2043
        %v2050 = vmul.f32 1.0, %v2049
        %v2051 = vrcp.pop %v2044
        %v2052 = vmul.f32 1.0, %v2051
        %v2053 = vxor.u32 %v1973, 2147483648
        %v2054 = vxor.u32 %v1975, 2147483648
        %v2055 = vxor.u32 %v1977, 2147483648
        %v2056 = vxor.u32 %v1979, 2147483648
        %v2057 = vmul.f32 %v2053, 1.442695
        %v2058 = vpow.pop %v2057
        %v2059 = vmul.f32 %v2054, 1.442695
        %v2060 = vpow.pop %v2059
        %v2061 = vmul.f32 %v2055, 1.442695
        %v2062 = vpow.pop %v2061
        %v2063 = vmul.f32 %v2056, 1.442695
        %v2064 = vpow.pop %v2063
        %v2065 = vadd.f32 %v2058, 1.0
        %v2066 = vadd.f32 %v2060, 1.0
        %v2067 = vadd.f32 %v2062, 1.0
        %v2068 = vadd.f32 %v2064, 1.0
        %v2069 = vrcp.pop %v2065
        %v2070 = vmul.f32 1.0, %v2069
        %v2071 = vrcp.pop %v2066
        %v2072 = vmul.f32 1.0, %v2071
        %v2073 = vrcp.pop %v2067
        %v2074 = vmul.f32 1.0, %v2073
        %v2075 = vrcp.pop %v2068
        %v2076 = vmul.f32 1.0, %v2075
        %v2077 = vmul.f32 %v1998, %v1022
        %v2078 = vmul.f32 %v2000, %v1023
        %v2079 = vmul.f32 %v2002, %v1024
        %v2080 = vmul.f32 %v2004, %v1025
        %v2081 = vpack.c.bf16 %v2079, %v2077
        %v2082 = vpack.c.bf16 %v2080, %v2078
        %v2083 = vmul.f32 %v2046, %v1026
        %v2084 = vmul.f32 %v2048, %v1027
        %v2085 = vmul.f32 %v2050, %v1028
        %v2086 = vmul.f32 %v2052, %v1029
        %v2087 = vpack.c.bf16 %v2085, %v2083
        %v2088 = vpack.c.bf16 %v2086, %v2084
        %v2089 = vld [vmem:[%s12 + $0x48] sm:$0xf]
        %v2090 = vld [vmem:[%s12 + $0x4c] sm:$0xf]
        %v2091 = vld [vmem:[%s12 + $0x50] sm:$0xf]
        %v2092 = vld [vmem:[%s12 + $0x54] sm:$0xf]
        %v2093 = vld [vmem:[%s13 + $0x90] sm:$0xff]
        %v2094 = vld [vmem:[%s13 + $0x98] sm:$0xff]
        %v2095 = vld [vmem:[%s13 + $0xa0] sm:$0xff]
        %v2096 = vld [vmem:[%s13 + $0xa8] sm:$0xff]
        %2098 = vset.pattern.permute.xlu0 0
        %2099 = vperm.xlu0 %2098, %v2093
        %v2100 = vpop.permute.xlu0 %2099
        %2103 = vset.pattern.permute.xlu0 0
        %2104 = vperm.xlu0 %2103, %v2094
        %v2105 = vpop.permute.xlu0 %2104
        %2108 = vset.pattern.permute.xlu0 0
        %2109 = vperm.xlu0 %2108, %v2095
        %v2110 = vpop.permute.xlu0 %2109
        %2113 = vset.pattern.permute.xlu0 0
        %2114 = vperm.xlu0 %2113, %v2096
        %v2115 = vpop.permute.xlu0 %2114
        %v2121 = vunpack.c.l.b16 %v2089
        %v2122 = vunpack.c.l.b16 %v2090
        %v2123 = vunpack.c.l.b16 %v2091
        %v2124 = vunpack.c.l.b16 %v2092
        %v2125 = vpack.c.b16 %v2122, %v2121
        %v2126 = vpack.c.b16 %v2124, %v2123
        %v2128 = vsel %vm1895, %v2125, 0
        %v2131 = vsel %vm1895, %v2126, 0
        %2133 = vmatprep.subr.bf16.mxu0 %v1814
        %2134 = vmatpush1.bf16.msra.mxu0 %v1813
        %2135 = vmatprep.subr.bf16.mxu0 %v2082
        %2136 = vmatpush1.bf16.msra.mxu0 %v2081
        %2137 = vmatprep.subr.bf16.mxu0 %v1816
        %2138 = vmatpush1.bf16.msra.mxu0 %v1815
        %2139 = vmatprep.subr.bf16.mxu0 %v2088
        %2140 = vmatpush1.bf16.msra.mxu0 %v2087
        %2141 = vmatprep.subr.bf16.mxu0 0
        %2142 = vmatpush1.bf16.msra.mxu0 0
        %2143 = vmatprep.subr.bf16.mxu0 0
        %2144 = vmatpush1.bf16.msra.mxu0 0
        %2145 = vmatprep.subr.bf16.mxu0 0
        %2146 = vmatpush1.bf16.msra.mxu0 0
        %2147 = vmatprep.subr.bf16.mxu0 0
        %2148 = vmatpush1.bf16.msra.mxu0 0
        %2149 = vmatprep.subr.bf16.mxu0 0
        %2150 = vmatpush1.bf16.msra.mxu0 0
        %2151 = vmatprep.subr.bf16.mxu0 0
        %2152 = vmatpush1.bf16.msra.mxu0 0
        %2153 = vmatprep.subr.bf16.mxu0 0
        %2154 = vmatpush1.bf16.msra.mxu0 0
        %2155 = vmatprep.subr.bf16.mxu0 0
        %2156 = vmatpush1.bf16.msra.mxu0 0
        %2157 = vmatprep.subr.bf16.mxu0 0
        %2158 = vmatpush1.bf16.msra.mxu0 0
        %2159 = vmatprep.subr.bf16.mxu0 0
        %2160 = vmatpush1.bf16.msra.mxu0 0
        %2161 = vmatprep.subr.bf16.mxu0 0
        %2162 = vmatpush1.bf16.msra.mxu0 0
        %2163 = vmatprep.subr.bf16.mxu0 0
        %2164 = vmatpush1.bf16.msra.mxu0 0
        %2165 = vmatprep.mubr.bf16.mxu0 0
        %2166 = vmatmul.mubr.bf16.gmra.mrb[0].mxu0 %v2128
        %v2167 = vpop.f32.mrb[0].mxu0
        %v2168 = vadd.f32 %v2100, %v2167
        %v2169 = vpop.f32.mrb[0].mxu0
        %v2170 = vadd.f32 %v2100, %v2169
        %v2171 = vpop.f32.mrb[0].mxu0
        %v2172 = vadd.f32 %v2105, %v2171
        %v2173 = vpop.f32.mrb[0].mxu0
        %v2174 = vadd.f32 %v2105, %v2173
        %2175 = vmatprep.mubr.bf16.mxu0 0
        %2176 = vmatmul.mubr.bf16.gmra.mrb[0].mxu0 %v2131
        %v2177 = vpop.f32.mrb[0].mxu0
        %v2178 = vadd.f32 %v2110, %v2177
        %v2179 = vpop.f32.mrb[0].mxu0
        %v2180 = vadd.f32 %v2110, %v2179
        %v2181 = vpop.f32.mrb[0].mxu0
        %v2182 = vadd.f32 %v2115, %v2181
        %v2183 = vpop.f32.mrb[0].mxu0
        %v2184 = vadd.f32 %v2115, %v2183
        %2185 = vdwg.mxu0
        %v2186 = vtanh.pop %v2168
        %v2187 = vtanh.pop %v2170
        %v2188 = vtanh.pop %v2172
        %v2189 = vtanh.pop %v2174
        %v2190 = vtanh.pop %v2178
        %v2191 = vtanh.pop %v2180
        %v2192 = vtanh.pop %v2182
        %v2193 = vtanh.pop %v2184
        %v2194 = vsub.f32 1.0, %v2022
        %v2195 = vsub.f32 1.0, %v2024
        %v2196 = vsub.f32 1.0, %v2026
        %v2197 = vsub.f32 1.0, %v2028
        %v2198 = vmul.f32 %v2194, %v1022
        %v2199 = vmul.f32 %v2195, %v1023
        %v2200 = vmul.f32 %v2196, %v1024
        %v2201 = vmul.f32 %v2197, %v1025
        %v2202 = vmul.f32 %v2022, %v2186
        %v2203 = vmul.f32 %v2024, %v2187
        %v2204 = vmul.f32 %v2026, %v2188
        %v2205 = vmul.f32 %v2028, %v2189
        %v2206 = vadd.f32 %v2198, %v2202
        %v2207 = vadd.f32 %v2199, %v2203
        %v2208 = vadd.f32 %v2200, %v2204
        %v2209 = vadd.f32 %v2201, %v2205
        %2210 = vst [vmem:[%s913] sm:$0xff] %v2206
        %2211 = vst [vmem:[%s913 + $0x8] sm:$0xff] %v2207
        %2212 = vst [vmem:[%s913 + $0x10] sm:$0xff] %v2208
        %2213 = vst [vmem:[%s913 + $0x18] sm:$0xff] %v2209
        %v2214 = vsub.f32 1.0, %v2070
        %v2215 = vsub.f32 1.0, %v2072
        %v2216 = vsub.f32 1.0, %v2074
        %v2217 = vsub.f32 1.0, %v2076
        %v2218 = vmul.f32 %v2214, %v1026
        %v2219 = vmul.f32 %v2215, %v1027
        %v2220 = vmul.f32 %v2216, %v1028
        %v2221 = vmul.f32 %v2217, %v1029
        %v2222 = vmul.f32 %v2070, %v2190
        %v2223 = vmul.f32 %v2072, %v2191
        %v2224 = vmul.f32 %v2074, %v2192
        %v2225 = vmul.f32 %v2076, %v2193
        %v2226 = vadd.f32 %v2218, %v2222
        %v2227 = vadd.f32 %v2219, %v2223
        %v2228 = vadd.f32 %v2220, %v2224
        %v2229 = vadd.f32 %v2221, %v2225
        %2230 = vst [vmem:[%s920] sm:$0xff] %v2226
        %2231 = vst [vmem:[%s920 + $0x8] sm:$0xff] %v2227
        %2232 = vst [vmem:[%s920 + $0x10] sm:$0xff] %v2228
        %2233 = vst [vmem:[%s920 + $0x18] sm:$0xff] %v2229
        %v2236 = vcombine.low %v1182, %v1184
        %2238 = vst [vmem:[%s1015] sm:$0x77] %v2236
        %s2239 = sand.u32 %s443, 1
        %s2240 = scalar_lea.sflag [#allocation4], %s2239
        %s2241 = sand.u32 %s443, 1
        %s2242 = smul.addr %s2241, 32
        %s2243 = scalar_lea.vmem [#allocation11], %s2242
        %s2244 = sand.u32 %s471, 1
        %s2245 = scalar_lea.sflag [#allocation13], %s2244
        %s2246 = sand.u32 %s471, 1
        %s2247 = smul.addr %s2246, 32
        %s2248 = scalar_lea.vmem [#allocation12], %s2247
        %s2249 = smul.u32 2, %s48
        %p2250 = scmp.lt.s32.totalorder %s47, 1
        %s2251 = scalar_select %p2250, %s47, 1
        %p2252 = scmp.lt.s32.totalorder %s2249, 1
        %s2253 = scalar_select %p2252, %s2249, 1
        %s2254 = smul.addr %s2251, 2
        %s2255 = sadd.s32 %s2253, %s2254
        %s2256 = smul.addr %s2255, 4
        %s2257 = scalar_lea.vmem %s16, %s2256
        // Predicated region
        $region97: #{tpu_custom_call.1} parent=75 // pred_check
          %p2258 = pneg %p453
        $region98: #{tpu_custom_call.1} parent=75 // pred_check_branch
          %2260 = sbr.rel (%p2258) target = $region100
        $region99: #{tpu_custom_call.1} parent=75 // pred_region
          %s2261 = smul.u32 2, %s48
          %s2263 = ssub.s32 512, 512
          %2264 = vsyncadd %s2240, %s2263
          %s2265 = smul.addr %s47, 4
          %s2266 = sadd.s32 %s2261, %s2265
          %s2267 = smul.addr %s2266, 128
          %s2268 = scalar_lea.hbm %s14, %s2267
          %s2269 = sshll.u32 %s2243, 4
          %s2270 = int_to_ptr.vmem [resolvable:$true] %s2269
          %2275 = dma.vmem_to_hbm [thread:$0]  %s2270, 512, %s2268, %s2240, 256, 256, 16
        $region100: #{tpu_custom_call.1} parent=75 // pred_fallthru
          _
        // Predicated region
        $region101: #{tpu_custom_call.1} parent=75 // pred_check
          %p2276 = pneg %p481
        $region102: #{tpu_custom_call.1} parent=75 // pred_check_branch
          %2278 = sbr.rel (%p2276) target = $region104
        $region103: #{tpu_custom_call.1} parent=75 // pred_region
          %s2279 = smul.u32 2, %s48
          %s2281 = ssub.s32 512, 512
          %2282 = vsyncadd %s2245, %s2281
          %s2283 = smul.addr %s47, 4
          %s2284 = sadd.s32 %s2279, %s2283
          %s2285 = smul.addr %s2284, 128
          %s2286 = scalar_lea.hbm %s15, %s2285
          %s2287 = sshll.u32 %s2248, 4
          %s2288 = int_to_ptr.vmem [resolvable:$true] %s2287
          %2293 = dma.vmem_to_hbm [thread:$0]  %s2288, 512, %s2286, %s2245, 256, 256, 16
        $region104: #{tpu_custom_call.1} parent=75 // pred_fallthru
          _
        // Predicated region
        $region105: #{tpu_custom_call.1} parent=75 // pred_check
          %p2294 = pneg %p509
        $region106: #{tpu_custom_call.1} parent=75 // pred_check_branch
          %2296 = sbr.rel (%p2294) target = $region108
        $region107: #{tpu_custom_call.1} parent=75 // pred_region
          %s2297 = smul.u32 2, %s48
        $region108: #{tpu_custom_call.1} parent=75 // pred_fallthru
          _
      $region76: #{tpu_custom_call.1} parent=5 // pred_fallthru
        _
      %p2298 = scmp.le.s32.totalorder 2, %s38
      // Predicated region
      $region109: #{tpu_custom_call.1} parent=5 // pred_check
        %p2299 = pneg %p2298
      $region110: #{tpu_custom_call.1} parent=5 // pred_check_branch
        %2301 = sbr.rel (%p2299) target = $region112
      $region111: #{tpu_custom_call.1} parent=5 // pred_region
        %s2302 = ssub.s32 %s38, 2
        // Predicated region
        $region113: #{tpu_custom_call.1} parent=111 // pred_check
          %p2303 = pneg %p459
        $region114: #{tpu_custom_call.1} parent=111 // pred_check_branch
          %2305 = sbr.rel (%p2303) target = $region116
        $region115: #{tpu_custom_call.1} parent=111 // pred_region
          %s2306 = sand.u32 %s444, 1
          %s2307 = scalar_lea.sflag [#allocation4], %s2306
          %s2308 = sand.u32 %s444, 1
          %s2309 = smul.addr %s2308, 32
          %s2310 = scalar_lea.vmem [#allocation11], %s2309
          %2311 = dma.done %s2307, 512
        $region116: #{tpu_custom_call.1} parent=111 // pred_fallthru
          _
        // Predicated region
        $region117: #{tpu_custom_call.1} parent=111 // pred_check
          %p2312 = pneg %p487
        $region118: #{tpu_custom_call.1} parent=111 // pred_check_branch
          %2314 = sbr.rel (%p2312) target = $region120
        $region119: #{tpu_custom_call.1} parent=111 // pred_region
          %s2315 = sand.u32 %s472, 1
          %s2316 = scalar_lea.sflag [#allocation13], %s2315
          %s2317 = sand.u32 %s472, 1
          %s2318 = smul.addr %s2317, 32
          %s2319 = scalar_lea.vmem [#allocation12], %s2318
          %2320 = dma.done %s2316, 512
        $region120: #{tpu_custom_call.1} parent=111 // pred_fallthru
          _
        // Predicated region
        $region121: #{tpu_custom_call.1} parent=111 // pred_check
          %p2321 = pneg %p515
        $region122: #{tpu_custom_call.1} parent=111 // pred_check_branch
          %2323 = sbr.rel (%p2321) target = $region124
        $region123: #{tpu_custom_call.1} parent=111 // pred_region
          %s2324 = smul.u32 2, %s50
          %p2325 = scmp.lt.s32.totalorder %s49, 1
          %s2326 = scalar_select %p2325, %s49, 1
          %p2327 = scmp.lt.s32.totalorder %s2324, 1
          %s2328 = scalar_select %p2327, %s2324, 1
          %s2329 = smul.addr %s2326, 2
          %s2330 = sadd.s32 %s2328, %s2329
          %s2331 = smul.addr %s2330, 4
          %s2332 = scalar_lea.vmem %s16, %s2331
        $region124: #{tpu_custom_call.1} parent=111 // pred_fallthru
          _
      $region112: #{tpu_custom_call.1} parent=5 // pred_fallthru
        _
    $region6: #{tpu_custom_call.1} parent=1 // loop_footer
      %s42 = sadd.s32 1, %s38
    $region7: #{tpu_custom_call.1} parent=1 // loop_footer_branch
      %37 = sbr.rel target = $region3
    $region8: #{tpu_custom_call.1} parent=1 // loop_exit
      _
    %2333 = vsyncpa [#allocation3], 1
    %s2334 = scalar_lea.sflag [#allocation3], 1
    %2335 = vsyncpa %s2334, 1
    %2336 = vsyncpa [#allocation6], 1
    %s2337 = scalar_lea.sflag [#allocation6], 1
    %2338 = vsyncpa %s2337, 1
    %2339 = vsyncpa [#allocation9], 1
    %s2340 = scalar_lea.sflag [#allocation9], 1
    %2341 = vsyncpa %s2340, 1
    %2342 = vsyncpa [#allocation4], 1
    %s2343 = scalar_lea.sflag [#allocation4], 1
    %2344 = vsyncpa %s2343, 1
    %2345 = vsyncpa [#allocation13], 1
    %s2346 = scalar_lea.sflag [#allocation13], 1
    %2347 = vsyncpa %s2346, 1

</llo_original>
